<compile_context>
chip_gen: v5e
topology: v5e:2x2
jax: 0.10.0
libtpu: 0.0.40
codegen_flags: <defaults>
</compile_context>

<pallas_src>
import math
import functools
from functools import partial

import jax
import jax.numpy as jnp
from jax import lax
from jax.experimental import pallas as pl
from jax.experimental.pallas import tpu as pltpu

ALPHA = 0.25                  # nn.PReLU() default slope (per-module, init 0.25)
ACT_DTYPE = jnp.bfloat16      # activation dtype between convs
_LPAD = 8                     # column where the image starts inside the padded
                              # VMEM scratch (keeps the copy-in store aligned)
_KW5_ORDER = (1, 2, 3, 0, 4)  # 5x5 tap-column order: central 3 first so the 3x3
                              # conv reuses an aligned lane-prefix of the lhs


def _round_up(x, m):
    return (x + m - 1) // m * m


# ----------------------------------------------------------------------------
# Capability probe: does roll + minor-axis concat lower & compute correctly?
# ----------------------------------------------------------------------------
_FOLD_OK = None


def _fold_ok():
    global _FOLD_OK
    if _FOLD_OK is not None:
        return _FOLD_OK
    C, W, KW = 96, 8, 3
    Wp = W + 16
    x = (jnp.arange(8 * Wp * C, dtype=jnp.float32) % 251.0 - 125.0)
    x = x.reshape(8, Wp, C).astype(ACT_DTYPE)

    def kern(x_ref, o_ref):
        slab = x_ref[...]
        wins = [pltpu.roll(slab, shift=-(_LPAD - 1 + kw), axis=1)[:, :W, :]
                for kw in range(KW)]
        o_ref[...] = jnp.concatenate(wins, axis=-1)

    try:
        got = pl.pallas_call(
            kern, out_shape=jax.ShapeDtypeStruct((8, W, KW * C), ACT_DTYPE))(x)
        got = jax.block_until_ready(got)
        want = jnp.concatenate(
            [x[:, _LPAD - 1 + kw:_LPAD - 1 + kw + W, :] for kw in range(KW)],
            axis=-1)
        _FOLD_OK = bool(jnp.array_equal(got, want))
    except Exception:
        _FOLD_OK = False
    return _FOLD_OK


def _win(slab, c0, W, use_roll):
    """slab[:, c0:c0+W, :]; with use_roll the shift goes to the XLU (rotate)."""
    if use_roll and (c0 % 8 != 0):
        return pltpu.roll(slab, shift=-c0, axis=1)[:, :W, :]
    return slab[:, c0:c0 + W, :]


# ----------------------------------------------------------------------------
# Generic conv kernels (implicit GEMM, in-kernel SAME halo, fused bias/PReLU)
# ----------------------------------------------------------------------------
def _conv1x1_kernel(x_ref, w_ref, b_ref, o_ref, *, TH, W, Cout, alpha, has_bias):
    a = x_ref[0].reshape(TH * W, x_ref.shape[-1])
    r = jnp.dot(a, w_ref[0], preferred_element_type=jnp.float32)
    if has_bias:
        r = r + b_ref[...]
    if alpha is not None:
        r = jnp.where(r >= 0.0, r, alpha * r)
    if Cout != r.shape[-1]:
        r = r[:, :Cout]
    o_ref[...] = r.reshape(1, TH, W, Cout).astype(o_ref.dtype)


def _convkxk_kernel(x_ref, w_ref, b_ref, o_ref, pad_ref, *,
                    KH, KW, TH, H, W, Cinp, Cout, alpha, has_bias, fold):
    i = pl.program_id(1)
    ph, pw = KH // 2, KW // 2

    @pl.when(i == 0)
    def _():
        pad_ref[...] = jnp.zeros_like(pad_ref)
        pad_ref[pl.ds(ph, H), pl.ds(_LPAD, W), :] = x_ref[0]

    h0 = pl.multiple_of(i * TH, TH)
    M = TH * W
    acc = None
    for kh in range(KH):
        slab = pad_ref[pl.ds(h0 + kh, TH), :, :]
        if fold:
            wins = [_win(slab, _LPAD - pw + kw, W, True) for kw in range(KW)]
            a = jnp.concatenate(wins, axis=-1).reshape(M, KW * Cinp)
            d = jnp.dot(a, w_ref[kh], preferred_element_type=jnp.float32)
            acc = d if acc is None else acc + d
        else:
            w_kh = w_ref[kh]
            for kw in range(KW):
                a = _win(slab, _LPAD - pw + kw, W, False).reshape(M, Cinp)
                d = jnp.dot(a, w_kh[kw * Cinp:(kw + 1) * Cinp, :],
                            preferred_element_type=jnp.float32)
                acc = d if acc is None else acc + d
    r = acc
    if has_bias:
        r = r + b_ref[...]
    if alpha is not None:
        r = jnp.where(r >= 0.0, r, alpha * r)
    if Cout != r.shape[-1]:
        r = r[:, :Cout]
    o_ref[...] = r.reshape(1, TH, W, Cout).astype(o_ref.dtype)


@functools.lru_cache(maxsize=None)
def _build_conv1x1(B, H, W, TH, Cinp, Cout, Coutp, alpha, has_bias, out_dtype_name):
    kernel = partial(_conv1x1_kernel, TH=TH, W=W, Cout=Cout, alpha=alpha,
                     has_bias=has_bias)
    return pl.pallas_call(
        kernel,
        out_shape=jax.ShapeDtypeStruct((B, H, W, Cout), jnp.dtype(out_dtype_name)),
        grid_spec=pltpu.PrefetchScalarGridSpec(
            num_scalar_prefetch=0, grid=(B, H // TH),
            in_specs=[
                pl.BlockSpec((1, TH, W, Cinp), lambda b, i: (b, i, 0, 0)),
                pl.BlockSpec((1, Cinp, Coutp), lambda b, i: (0, 0, 0)),
                pl.BlockSpec((1, Coutp), lambda b, i: (0, 0)),
            ],
            out_specs=pl.BlockSpec((1, TH, W, Cout), lambda b, i: (b, i, 0, 0)),
        ),
        compiler_params=pltpu.CompilerParams(
            dimension_semantics=("parallel", "parallel")),
    )


@functools.lru_cache(maxsize=None)
def _build_convkxk(B, H, W, TH, Cinp, Cout, Coutp, KH, KW, alpha, has_bias,
                   out_dtype_name):
    fold = _fold_ok() and Cinp >= 64 and KW > 1
    kernel = partial(_convkxk_kernel, KH=KH, KW=KW, TH=TH, H=H, W=W, Cinp=Cinp,
                     Cout=Cout, alpha=alpha, has_bias=has_bias, fold=fold)
    Hp = H + KH - 1
    Wp = W + 16
    return pl.pallas_call(
        kernel,
        out_shape=jax.ShapeDtypeStruct((B, H, W, Cout), jnp.dtype(out_dtype_name)),
        grid_spec=pltpu.PrefetchScalarGridSpec(
            num_scalar_prefetch=0, grid=(B, H // TH),
            in_specs=[
                # whole image per batch element (resident across the H-tile axis)
                pl.BlockSpec((1, H, W, Cinp), lambda b, i: (b, 0, 0, 0)),
                pl.BlockSpec((KH, KW * Cinp, Coutp), lambda b, i: (0, 0, 0)),
                pl.BlockSpec((1, Coutp), lambda b, i: (0, 0)),
            ],
            out_specs=pl.BlockSpec((1, TH, W, Cout), lambda b, i: (b, i, 0, 0)),
            scratch_shapes=[pltpu.VMEM((Hp, Wp, Cinp), ACT_DTYPE)],
        ),
        compiler_params=pltpu.CompilerParams(
            dimension_semantics=("parallel", "arbitrary")),
    )


# ----------------------------------------------------------------------------
# Fused FRM tail: trans1 -> PReLU -> pool -> down -> swish -> up -> sigmoid ->
#                 scale -> trans2 -> PReLU   (operates on [M, C] inside a kernel)
# ----------------------------------------------------------------------------
def _frm_tail(y, t1_ref, fd_ref, fu_ref, t2_ref, af1, af2):
    ex = jnp.dot(y.astype(ACT_DTYPE), t1_ref[...], preferred_element_type=jnp.float32)
    ex = jnp.where(ex >= 0.0, ex, af1 * ex)
    p = jnp.mean(ex, axis=0, keepdims=True)
    p8 = jnp.broadcast_to(p, (8, ex.shape[1])).astype(ACT_DTYPE)
    d = jnp.dot(p8, fd_ref[...], preferred_element_type=jnp.float32)
    d = d * jax.nn.sigmoid(d)                       # swish
    u = jnp.dot(d.astype(ACT_DTYPE), fu_ref[...], preferred_element_type=jnp.float32)
    fw = jax.nn.sigmoid(u[0:1, :])
    out = jnp.dot((ex * fw).astype(ACT_DTYPE), t2_ref[...],
                  preferred_element_type=jnp.float32)
    return jnp.where(out >= 0.0, out, af2 * out)


def _frm_kernel(x_ref, t1_ref, fd_ref, fu_ref, t2_ref, o_ref, *,
                H, W, Cin, Cout, af1, af2):
    M = H * W
    xin = x_ref[0].reshape(M, Cin)
    out = _frm_tail(xin, t1_ref, fd_ref, fu_ref, t2_ref, af1, af2)
    o_ref[...] = out[:, :Cout].reshape(1, H, W, Cout).astype(o_ref.dtype)


@functools.lru_cache(maxsize=None)
def _build_frm(B, H, W, Cin, Cout, af1, af2):
    Cex = 4 * Cin
    kernel = partial(_frm_kernel, H=H, W=W, Cin=Cin, Cout=Cout, af1=af1, af2=af2)
    return pl.pallas_call(
        kernel,
        out_shape=jax.ShapeDtypeStruct((B, H, W, Cout), ACT_DTYPE),
        grid_spec=pltpu.PrefetchScalarGridSpec(
            num_scalar_prefetch=0, grid=(B,),
            in_specs=[
                pl.BlockSpec((1, H, W, Cin), lambda b: (b, 0, 0, 0)),
                pl.BlockSpec((Cin, Cex), lambda b: (0, 0)),
                pl.BlockSpec((Cex, 128), lambda b: (0, 0)),
                pl.BlockSpec((128, Cex), lambda b: (0, 0)),
                pl.BlockSpec((Cex, 128), lambda b: (0, 0)),
            ],
            out_specs=pl.BlockSpec((1, H, W, Cout), lambda b: (b, 0, 0, 0)),
        ),
        compiler_params=pltpu.CompilerParams(dimension_semantics=("arbitrary",)),
    )


def frm_call(x, p):
    B, H, W, Cin = x.shape
    f = _build_frm(B, H, W, Cin, p["cout"], *p["alphas"])
    return f(x.astype(ACT_DTYPE), p["t1"], p["fd"], p["fu"], p["t2"])


# ----------------------------------------------------------------------------
# Fully fused make_mix kernel: 3x3 conv + 5x5 conv + PReLUs + SE gate + FRM
# ----------------------------------------------------------------------------
def _mix_kernel(x_ref, w3_ref, w5_ref, md_ref, mu_ref, t1_ref, fd_ref, fu_ref,
                t2_ref, o_ref, pad_ref, *, H, W, Cin, a1, a2, ak, af1, af2, fold):
    pad_ref[...] = jnp.zeros_like(pad_ref)
    pad_ref[pl.ds(2, H), pl.ds(_LPAD, W), :] = x_ref[0]

    M = H * W
    acc3 = None
    acc5 = None
    for kh in range(5):
        slab = pad_ref[pl.ds(kh, H), :, :]
        if fold:
            wins = [_win(slab, _LPAD - 2 + kw, W, True) for kw in _KW5_ORDER]
            a5 = jnp.concatenate(wins, axis=-1).reshape(M, 5 * Cin)
            d5 = jnp.dot(a5, w5_ref[kh], preferred_element_type=jnp.float32)
            acc5 = d5 if acc5 is None else acc5 + d5
            if 1 <= kh <= 3:
                d3 = jnp.dot(a5[:, :3 * Cin], w3_ref[kh - 1],
                             preferred_element_type=jnp.float32)
                acc3 = d3 if acc3 is None else acc3 + d3
        else:
            w5_kh = w5_ref[kh]
            w3_kh = w3_ref[kh - 1] if 1 <= kh <= 3 else None
            for j, kw in enumerate(_KW5_ORDER):
                a = _win(slab, _LPAD - 2 + kw, W, False).reshape(M, Cin)
                d5 = jnp.dot(a, w5_kh[j * Cin:(j + 1) * Cin, :],
                             preferred_element_type=jnp.float32)
                acc5 = d5 if acc5 is None else acc5 + d5
                if w3_kh is not None and j < 3:
                    d3 = jnp.dot(a, w3_kh[j * Cin:(j + 1) * Cin, :],
                                 preferred_element_type=jnp.float32)
                    acc3 = d3 if acc3 is None else acc3 + d3

    y1 = jnp.where(acc3 >= 0.0, acc3, a1 * acc3)
    y2 = jnp.where(acc5 >= 0.0, acc5, a2 * acc5)
    y = y1 + y2                                     # [M, 128] f32, lanes >=64 are 0

    # ---- make_mix squeeze-excite gate ----
    ks = jnp.mean(y, axis=0, keepdims=True)
    ks8 = jnp.broadcast_to(ks, (8, y.shape[1])).astype(ACT_DTYPE)
    cd = jnp.dot(ks8, md_ref[...], preferred_element_type=jnp.float32)
    cd = jnp.where(cd >= 0.0, cd, ak * cd)
    cu = jnp.dot(cd.astype(ACT_DTYPE), mu_ref[...], preferred_element_type=jnp.float32)
    y = y * jax.nn.sigmoid(cu[0:1, :])

    # ---- FRM(growthRate, growthRate) ----
    out = _frm_tail(y, t1_ref, fd_ref, fu_ref, t2_ref, af1, af2)
    o_ref[...] = out[:, :64].reshape(1, H, W, 64).astype(o_ref.dtype)


@functools.lru_cache(maxsize=None)
def _build_mix(B, H, W, Cin, alphas):
    a1, a2, ak, af1, af2 = alphas
    fold = _fold_ok() and Cin >= 64
    kernel = partial(_mix_kernel, H=H, W=W, Cin=Cin,
                     a1=a1, a2=a2, ak=ak, af1=af1, af2=af2, fold=fold)
    Hp = H + 4
    Wp = W + 16
    return pl.pallas_call(
        kernel,
        out_shape=jax.ShapeDtypeStruct((B, H, W, 64), ACT_DTYPE),
        grid_spec=pltpu.PrefetchScalarGridSpec(
            num_scalar_prefetch=0, grid=(B,),
            in_specs=[
                pl.BlockSpec((1, H, W, Cin), lambda b: (b, 0, 0, 0)),
                pl.BlockSpec((3, 3 * Cin, 128), lambda b: (0, 0, 0)),
                pl.BlockSpec((5, 5 * Cin, 128), lambda b: (0, 0, 0)),
                pl.BlockSpec((128, 128), lambda b: (0, 0)),
                pl.BlockSpec((128, 128), lambda b: (0, 0)),
                pl.BlockSpec((128, 256), lambda b: (0, 0)),
                pl.BlockSpec((256, 128), lambda b: (0, 0)),
                pl.BlockSpec((128, 256), lambda b: (0, 0)),
                pl.BlockSpec((256, 128), lambda b: (0, 0)),
            ],
            out_specs=pl.BlockSpec((1, H, W, 64), lambda b: (b, 0, 0, 0)),
            scratch_shapes=[pltpu.VMEM((Hp, Wp, Cin), ACT_DTYPE)],
        ),
        compiler_params=pltpu.CompilerParams(dimension_semantics=("arbitrary",)),
    )


def mix_call(x, p):
    B, H, W, Cin = x.shape
    assert Cin == p["cin"], (Cin, p["cin"])
    f = _build_mix(B, H, W, Cin, p["alphas"])
    return f(x.astype(ACT_DTYPE), p["w3"], p["w5"], p["md"], p["mu"],
             p["t1"], p["fd"], p["fu"], p["t2"])


# ----------------------------------------------------------------------------
# Parameter preparation (done once at build time: pad / permute / cast)
# ----------------------------------------------------------------------------
def prep_conv(w_hwio, b=None):
    KH, KW, Cin, Cout = w_hwio.shape
    if Cout < 8:
        # Cout == 1 convs: negligible compute, keep off the padded-N MXU path.
        return {"use_jax": True, "kh": KH, "kw": KW, "cin": Cin, "cout": Cout,
                "w_hwio": jnp.asarray(w_hwio, jnp.float32),
                "b_raw": None if b is None else jnp.asarray(b, jnp.float32)}
    Cinp = _round_up(max(Cin, 8), 8)
    Coutp = _round_up(Cout, 128)
    w = jnp.pad(jnp.asarray(w_hwio, jnp.float32),
                ((0, 0), (0, 0), (0, Cinp - Cin), (0, Coutp - Cout)))
    bp = jnp.zeros((1, Coutp), jnp.float32)
    if b is not None:
        bp = bp.at[0, :Cout].set(jnp.asarray(b, jnp.float32))
    return {"kh": KH, "kw": KW, "cin": Cin, "cinp": Cinp, "cout": Cout,
            "coutp": Coutp, "has_bias": b is not None,
            "w": w.reshape(KH, KW * Cinp, Coutp).astype(ACT_DTYPE), "b": bp}


def prep_mat(m, rows, cols):
    m = jnp.asarray(m, jnp.float32)
    r, c = m.shape
    return jnp.pad(m, ((0, rows - r), (0, cols - c))).astype(ACT_DTYPE)


def prep_mix(w3, w5, mdown, mup, ft1, fdown, fup, ft2, alphas=(ALPHA,) * 5):
    Cin = w3.shape[2]
    Coutp = 128

    def pack(w, order=None):
        KH, KW, _, co = w.shape
        wp = jnp.pad(jnp.asarray(w, jnp.float32),
                     ((0, 0), (0, 0), (0, 0), (0, Coutp - co)))
        if order is not None:
            wp = wp[:, list(order)]
        return wp.reshape(KH, KW * Cin, Coutp).astype(ACT_DTYPE)

    return {"cin": Cin,
            "w3": pack(w3),
            "w5": pack(w5, _KW5_ORDER),
            "md": prep_mat(mdown, 128, 128),
            "mu": prep_mat(mup, 128, 128),
            "t1": prep_mat(ft1, 128, 256),
            "fd": prep_mat(fdown, 256, 128),
            "fu": prep_mat(fup, 128, 256),
            "t2": prep_mat(ft2, 256, 128),
            "alphas": tuple(float(a) for a in alphas)}


def prep_frm(t1, fd, fu, t2, alphas=(ALPHA, ALPHA)):
    Cin = t1.shape[0]
    Cex = 4 * Cin
    return {"cin": Cin, "cout": t2.shape[1],
            "t1": prep_mat(t1, Cin, Cex), "fd": prep_mat(fd, Cex, 128),
            "fu": prep_mat(fu, 128, Cex), "t2": prep_mat(t2, Cex, 128),
            "alphas": tuple(float(a) for a in alphas)}


# ----------------------------------------------------------------------------
# Conv2d ("SAME", stride 1) dispatcher
# ----------------------------------------------------------------------------
def conv2d(x, p, *, prelu_alpha=None, out_dtype=ACT_DTYPE):
    if p.get("use_jax", False):
        y = lax.conv_general_dilated(
            x.astype(jnp.float32), p["w_hwio"], (1, 1), "SAME",
            dimension_numbers=("NHWC", "HWIO", "NHWC"))
        if p["b_raw"] is not None:
            y = y + p["b_raw"]
        if prelu_alpha is not None:
            y = jnp.where(y >= 0.0, y, prelu_alpha * y)
        return y.astype(out_dtype)

    B, H, W, Cx = x.shape
    KH, KW = p["kh"], p["kw"]
    Cin, Cinp, Cout, Coutp = p["cin"], p["cinp"], p["cout"], p["coutp"]
    assert Cx == Cin, (Cx, Cin)
    xk = x.astype(ACT_DTYPE)
    if Cinp != Cin:                      # only conv_input (Cin = 1 -> 8), once
        xk = jnp.pad(xk, ((0, 0), (0, 0), (0, 0), (0, Cinp - Cin)))

    TH = min(H, max(1, 2048 // W))       # ~2048-row GEMM M-tile per grid step
    while H % TH:
        TH -= 1
    alpha = None if prelu_alpha is None else float(prelu_alpha)
    if KH == 1 and KW == 1:
        f = _build_conv1x1(B, H, W, TH, Cinp, Cout, Coutp, alpha,
                           p["has_bias"], jnp.dtype(out_dtype).name)
    else:
        f = _build_convkxk(B, H, W, TH, Cinp, Cout, Coutp, KH, KW, alpha,
                           p["has_bias"], jnp.dtype(out_dtype).name)
    return f(xk, p["w"], p["b"])


def pixel_shuffle2(x):
    """nn.PixelShuffle(2) expressed in NHWC (pure layout, left to XLA)."""
    B, H, W, C4 = x.shape
    C = C4 // 4
    x = x.reshape(B, H, W, C, 2, 2)
    x = jnp.transpose(x, (0, 1, 4, 2, 5, 3))
    return x.reshape(B, 2 * H, 2 * W, C)


# ----------------------------------------------------------------------------
# Module forwards
# ----------------------------------------------------------------------------
def upsample_fwd(x, p):
    # PReLU slope is scalar -> commutes with PixelShuffle; fused into the conv.
    y = conv2d(x, p["conv"], prelu_alpha=p["alpha"])
    return pixel_shuffle2(y)


def mlb_fwd(x, p):
    out = x
    for mp in p["dense"]:
        C = out.shape[-1]
        y = mix_call(out, mp)
        out = jnp.concatenate(
            [out[..., :C - 32], out[..., C - 32:] + y[..., :32], y[..., 32:]],
            axis=-1)
    c = conv2d(out, p["conv_1x1"])
    return c + frm_call(x, p["frm"])


def net_forward(params, x_nchw):
    B = x_nchw.shape[0]
    x = jnp.transpose(x_nchw, (0, 2, 3, 1)).astype(jnp.float32)   # NCHW -> NHWC

    # MeanShiftY: 1x1 single-channel conv == scalar affine
    x = x * params["sub_mean"]["w"] + params["sub_mean"]["b"]
    x = x.astype(ACT_DTYPE)

    out = conv2d(x, params["conv_input"], prelu_alpha=params["alpha_relu"])
    conv1 = conv2d(out, params["conv_input2"])
    f = conv1
    feats = []
    for i in range(8):
        f = mlb_fwd(f, params["mlb"][i])
        feats.append(f)

    # main upscale branch
    u1 = upsample_fwd(out, params["u1"])
    u2 = upsample_fwd(u1, params["u2"])
    u3 = upsample_fwd(u2, params["u3"])
    u3s = conv2d(u3, params["convt_shape1"], out_dtype=jnp.float32)   # Cout=1

    # three HR branches share weights -> stack on the batch axis, run once
    cf = jnp.concatenate([feats[5], feats[6], feats[7]], axis=0)
    r1 = upsample_fwd(cf, params["ures1"])
    r2 = upsample_fwd(r1, params["ures2"])
    r3 = upsample_fwd(r2, params["ures3"])
    G = conv2d(r3, params["conv_G"])                                  # 64 -> 128
    g1 = G[..., 0:64]
    g2 = G[..., 64:128]
    gu1 = conv2d(G, params["sa"], out_dtype=jnp.float32)              # 128 -> 1
    gc = (g1.astype(jnp.float32) * gu1 + g2.astype(jnp.float32)) * 0.5
    convt_R1 = conv2d(gc, params["convt_R1"], out_dtype=jnp.float32)  # 64 -> 1
    tmp = u3s + convt_R1                                              # broadcast B
    tmp = tmp * params["add_mean"]["w"] + params["add_mean"]["b"]

    to_nchw = lambda a: jnp.transpose(a.astype(jnp.float32), (0, 3, 1, 2))
    HR = [to_nchw(tmp[i * B:(i + 1) * B]) for i in range(3)]
    HUR = [to_nchw(convt_R1[i * B:(i + 1) * B]) for i in range(3)]
    return HR, to_nchw(u2), HUR


# ----------------------------------------------------------------------------
# Deterministic synthetic parameters (mirrors the Conv2d He-style init)
# ----------------------------------------------------------------------------
class _Init:
    def __init__(self, key):
        self.key = key
        self.n = 0

    def _normal(self, shape, std):
        self.n += 1
        return std * jax.random.normal(jax.random.fold_in(self.key, self.n),
                                       shape, jnp.float32)

    def conv_w(self, kh, kw, cin, cout):
        return self._normal((kh, kw, cin, cout), math.sqrt(2.0 / (kh * kw * cout)))

    def mat(self, cin, cout):
        return self._normal((cin, cout), math.sqrt(2.0 / cout))


def make_mlb_params(init, nch=64, ndense=4, growth=64):
    dense = []
    c = nch
    for _ in range(ndense):
        dense.append(prep_mix(
            init.conv_w(3, 3, c, growth),
            init.conv_w(5, 5, c, growth),
            init.mat(growth, growth // 4),
            init.mat(growth // 4, growth),
            init.mat(growth, growth * 4),
            init.mat(growth * 4, growth // 4),
            init.mat(growth // 4, growth * 4),
            init.mat(growth * 4, growth),
        ))
        c += 32
    return {"dense": dense,
            "conv_1x1": prep_conv(init.conv_w(1, 1, c, nch)),
            "frm": prep_frm(init.mat(nch, nch * 4), init.mat(nch * 4, nch // 4),
                            init.mat(nch // 4, nch * 4), init.mat(nch * 4, nch))}


def make_net_params(key):
    init = _Init(key)
    ms = lambda sign: {"w": 1.0, "b": sign * 0.43806}     # MeanShiftY (std=1.0)
    ups = lambda: {"conv": prep_conv(init.conv_w(3, 3, 64, 256),
                                     b=jnp.zeros((256,), jnp.float32)),
                   "alpha": ALPHA}
    return {
        "sub_mean": ms(-1.0), "add_mean": ms(1.0), "alpha_relu": ALPHA,
        "conv_input": prep_conv(init.conv_w(3, 3, 1, 64)),
        "conv_input2": prep_conv(init.conv_w(3, 3, 64, 64)),
        "u1": ups(), "u2": ups(), "u3": ups(),
        "ures1": ups(), "ures2": ups(), "ures3": ups(),
        "sa": prep_conv(init.conv_w(1, 1, 128, 1)),
        "conv_G": prep_conv(init.conv_w(1, 1, 64, 128)),
        "convt_R1": prep_conv(init.conv_w(3, 3, 64, 1)),
        "convt_shape1": prep_conv(init.conv_w(3, 3, 64, 1)),
        "mlb": [make_mlb_params(init) for _ in range(8)],
    }


# ----------------------------------------------------------------------------
# Pure-JAX references (bf16-rounded operands, f32 accumulation) + sanity checks
# ----------------------------------------------------------------------------
def _ref_conv(x, w, b, alpha):
    y = lax.conv_general_dilated(
        x.astype(ACT_DTYPE).astype(jnp.float32),
        jnp.asarray(w).astype(ACT_DTYPE).astype(jnp.float32),
        (1, 1), "SAME", dimension_numbers=("NHWC", "HWIO", "NHWC"),
        precision=lax.Precision.HIGHEST)
    if b is not None:
        y = y + b
    if alpha is not None:
        y = jnp.where(y >= 0.0, y, alpha * y)
    return y


def _bf16_mm(a, b):
    return jnp.dot(a.astype(ACT_DTYPE).astype(jnp.float32),
                   jnp.asarray(b).astype(ACT_DTYPE).astype(jnp.float32),
                   precision=lax.Precision.HIGHEST)


def _ref_frm(x, t1, fd, fu, t2, af1, af2):
    B, H, W, C = x.shape
    ex = _bf16_mm(x.reshape(B * H * W, C), t1).reshape(B, H, W, -1)
    ex = jnp.where(ex >= 0.0, ex, af1 * ex)
    p = jnp.mean(ex, axis=(1, 2))
    d = _bf16_mm(p, fd)
    d = d * jax.nn.sigmoid(d)
    u = _bf16_mm(d, fu)
    fw = jax.nn.sigmoid(u)[:, None, None, :]
    out = _bf16_mm((ex * fw).reshape(B * H * W, -1), t2).reshape(B, H, W, -1)
    return jnp.where(out >= 0.0, out, af2 * out)


def _ref_mix(x, w3, w5, md, mu, t1, fd, fu, t2, al):
    a1, a2, ak, af1, af2 = al
    y1 = _ref_conv(x, w3, None, a1)
    y2 = _ref_conv(x, w5, None, a2)
    y = y1 + y2
    ks = jnp.mean(y, axis=(1, 2))
    cd = _bf16_mm(ks, md)
    cd = jnp.where(cd >= 0.0, cd, ak * cd)
    cu = _bf16_mm(cd, mu)
    y = y * jax.nn.sigmoid(cu)[:, None, None, :]
    return _ref_frm(y, t1, fd, fu, t2, af1, af2)


def _sanity_checks():
    key = jax.random.PRNGKey(1)

    cases = [  # kh, kw, cin, cout, bias, prelu, (B, H, W)
        (3, 3, 1, 64, False, True, (1, 8, 8)),
        (3, 3, 64, 256, True, True, (3, 16, 16)),
        (1, 1, 192, 64, False, False, (1, 8, 8)),
    ]
    for idx, (kh, kw, cin, cout, use_b, use_p, (bb, hh, ww)) in enumerate(cases):
        k1, k2, k3 = jax.random.split(jax.random.fold_in(key, idx), 3)
        x = jax.random.normal(k1, (bb, hh, ww, cin), jnp.float32)
        w = jax.random.normal(k2, (kh, kw, cin, cout), jnp.float32) * math.sqrt(
            2.0 / (kh * kw * cout))
        b = 0.1 * jax.random.normal(k3, (cout,), jnp.float32) if use_b else None
        p = prep_conv(w, b)
        got = conv2d(x, p, prelu_alpha=ALPHA if use_p else None,
                     out_dtype=jnp.float32)
        want = _ref_conv(x, w, b, ALPHA if use_p else None)
        assert jnp.allclose(got, want, atol=2.5e-2, rtol=2.5e-2), \
            ("conv sanity failed", kh, kw, cin, cout,
             float(jnp.max(jnp.abs(got - want))))

    cin = 96
    kk = jax.random.split(jax.random.fold_in(key, 100), 9)
    x = jax.random.normal(kk[0], (1, 8, 8, cin), jnp.float32)
    w3 = jax.random.normal(kk[1], (3, 3, cin, 64), jnp.float32) * math.sqrt(2.0 / (9 * 64))
    w5 = jax.random.normal(kk[2], (5, 5, cin, 64), jnp.float32) * math.sqrt(2.0 / (25 * 64))
    md = jax.random.normal(kk[3], (64, 16), jnp.float32) * math.sqrt(2.0 / 16)
    mu = jax.random.normal(kk[4], (16, 64), jnp.float32) * math.sqrt(2.0 / 64)
    t1 = jax.random.normal(kk[5], (64, 256), jnp.float32) * math.sqrt(2.0 / 256)
    fd = jax.random.normal(kk[6], (256, 16), jnp.float32) * math.sqrt(2.0 / 16)
    fu = jax.random.normal(kk[7], (16, 256), jnp.float32) * math.sqrt(2.0 / 256)
    t2 = jax.random.normal(kk[8], (256, 64), jnp.float32) * math.sqrt(2.0 / 64)
    pm = prep_mix(w3, w5, md, mu, t1, fd, fu, t2)
    got = mix_call(x.astype(ACT_DTYPE), pm).astype(jnp.float32)
    want = _ref_mix(x, w3, w5, md, mu, t1, fd, fu, t2, pm["alphas"])
    assert jnp.allclose(got, want, atol=6e-2, rtol=4e-2), \
        ("mix sanity failed", float(jnp.max(jnp.abs(got - want))))

    pf = prep_frm(t1, fd, fu, t2)
    xf = jax.random.normal(jax.random.fold_in(key, 200), (1, 8, 8, 64), jnp.float32)
    got = frm_call(xf.astype(ACT_DTYPE), pf).astype(jnp.float32)
    want = _ref_frm(xf.astype(ACT_DTYPE).astype(jnp.float32), t1, fd, fu, t2,
                    ALPHA, ALPHA)
    assert jnp.allclose(got, want, atol=6e-2, rtol=4e-2), \
        ("frm sanity failed", float(jnp.max(jnp.abs(got - want))))


# ----------------------------------------------------------------------------
# Main
# ----------------------------------------------------------------------------
if __name__ == "__main__":
    _fold_ok()          # resolve the roll/lane-concat capability probe first
    _sanity_checks()

    key = jax.random.PRNGKey(0)
    pkey, xkey = jax.random.split(key)
    params = make_net_params(pkey)

    # Small input consistent with the module: single-channel NCHW image.
    x = jax.random.normal(xkey, (1, 1, 8, 8), jnp.float32)

    fwd = jax.jit(partial(net_forward, params))
    HR, u2, HUR = fwd(x)
    HR = [jax.block_until_ready(a) for a in HR]
    u2 = jax.block_until_ready(u2)
    HUR = [jax.block_until_ready(a) for a in HUR]

    assert len(HR) == 3 and len(HUR) == 3
    assert HR[0].shape == (1, 1, 64, 64)          # 8x upscale, 1 channel (NCHW)
    assert HUR[0].shape == (1, 1, 64, 64)
    assert u2.shape == (1, 64, 32, 32)            # 4x upscale, 64 channels (NCHW)
    assert all(bool(jnp.all(jnp.isfinite(a))) for a in HR + HUR + [u2])

    print("KERNEL_OK")
</pallas_src>

<mosaic_0001>
module attributes {stable_mosaic.version = 11 : i64} {
  func.func @_convkxk_kernel(%arg0: i32, %arg1: i32, %arg2: memref<1x8x8x8xbf16, #tpu.memory_space<vmem>>, %arg3: memref<3x24x128xbf16, #tpu.memory_space<vmem>>, %arg4: memref<1x128xf32, #tpu.memory_space<vmem>>, %arg5: memref<1x8x8x64xf32, #tpu.memory_space<vmem>>, %arg6: memref<10x24x8xbf16, #tpu.memory_space<vmem>>) attributes {dimension_semantics = [#tpu.dimension_semantics<parallel>, #tpu.dimension_semantics<arbitrary>], iteration_bounds = array<i64: 1, 1>, scalar_prefetch = 0 : i64, scratch_operands = 1 : i64, tpu.core_type = #tpu.core_type<tc>, window_params = [{transform_indices = @transform_0, window_bounds = array<i64: 1, 8, 8, 8>}, {pipeline_mode = #tpu.pipeline_mode<synchronous>, transform_indices = @transform_1, window_bounds = array<i64: 3, 24, 128>}, {pipeline_mode = #tpu.pipeline_mode<synchronous>, transform_indices = @transform_2, window_bounds = array<i64: 1, 128>}, {transform_indices = @transform_3, window_bounds = array<i64: 1, 8, 8, 64>}]} {
    %c0_i32 = arith.constant 0 : i32
    %0 = arith.cmpi eq, %arg1, %c0_i32 : i32
    %1 = arith.extui %0 : i1 to i32
    %c0_i32_0 = arith.constant 0 : i32
    %2 = arith.cmpi ne, %1, %c0_i32_0 : i32
    scf.if %2 {
      %cst_28 = arith.constant 0.000000e+00 : bf16
      %72 = vector.broadcast %cst_28 : bf16 to vector<10x24x8xbf16>
      %c0_29 = arith.constant 0 : index
      %c0_30 = arith.constant 0 : index
      %c0_31 = arith.constant 0 : index
      %73 = vector.load %arg6[%c0_29, %c0_30, %c0_31] : memref<10x24x8xbf16, #tpu.memory_space<vmem>>, vector<10x24x8xbf16>
      tpu.vector_store %arg6[%c0_29, %c0_30, %c0_31], %72 {strides = array<i32>} : memref<10x24x8xbf16, #tpu.memory_space<vmem>>, vector<10x24x8xbf16>,
      %c0_32 = arith.constant 0 : index
      %c0_33 = arith.constant 0 : index
      %c0_34 = arith.constant 0 : index
      %c0_35 = arith.constant 0 : index
      %74 = vector.load %arg2[%c0_32, %c0_33, %c0_34, %c0_35] : memref<1x8x8x8xbf16, #tpu.memory_space<vmem>>, vector<1x8x8x8xbf16>
      %75 = vector.shape_cast %74 : vector<1x8x8x8xbf16> to vector<8x8x8xbf16>
      %c1_36 = arith.constant 1 : index
      %c8 = arith.constant 8 : index
      %c0_37 = arith.constant 0 : index
      %76 = vector.load %arg6[%c1_36, %c8, %c0_37] : memref<10x24x8xbf16, #tpu.memory_space<vmem>>, vector<8x8x8xbf16>
      tpu.vector_store %arg6[%c1_36, %c8, %c0_37], %75 {strides = array<i32>} : memref<10x24x8xbf16, #tpu.memory_space<vmem>>, vector<8x8x8xbf16>,
    } else {
    }
    %c8_i32 = arith.constant 8 : i32
    %3 = arith.muli %arg1, %c8_i32 : i32
    %4 = tpu.assume_multiple %3, 8 : i32
    %c0_i32_1 = arith.constant 0 : i32
    %5 = arith.addi %4, %c0_i32_1 : i32
    %6 = arith.index_cast %5 : i32 to index
    %c0 = arith.constant 0 : index
    %c0_2 = arith.constant 0 : index
    %7 = vector.load %arg6[%6, %c0, %c0_2] : memref<10x24x8xbf16, #tpu.memory_space<vmem>>, vector<8x24x8xbf16>
    %c0_3 = arith.constant 0 : index
    %c0_4 = arith.constant 0 : index
    %c0_5 = arith.constant 0 : index
    %8 = vector.load %arg3[%c0_3, %c0_4, %c0_5] : memref<3x24x128xbf16, #tpu.memory_space<vmem>>, vector<1x24x128xbf16>
    %9 = vector.shape_cast %8 : vector<1x24x128xbf16> to vector<24x128xbf16>
    %10 = vector.extract_strided_slice %7 {offsets = [0, 7, 0], sizes = [8, 8, 8], strides = [1, 1, 1]} : vector<8x24x8xbf16> to vector<8x8x8xbf16>
    %11 = vector.shape_cast %10 : vector<8x8x8xbf16> to vector<64x8xbf16>
    %12 = vector.extract_strided_slice %9 {offsets = [0, 0], sizes = [8, 128], strides = [1, 1]} : vector<24x128xbf16> to vector<8x128xbf16>
    %cst = arith.constant dense<0.000000e+00> : vector<64x128xf32>
    %13 = tpu.matmul %11, %12, %cst {dimension_numbers = #tpu.dot_dimension_numbers<[1], [0], [0], [1], [0, 0, 1, 1], [], []>} : vector<64x8xbf16>, vector<8x128xbf16>, vector<64x128xf32> -> vector<64x128xf32>
    %14 = vector.extract_strided_slice %7 {offsets = [0, 8, 0], sizes = [8, 8, 8], strides = [1, 1, 1]} : vector<8x24x8xbf16> to vector<8x8x8xbf16>
    %15 = vector.shape_cast %14 : vector<8x8x8xbf16> to vector<64x8xbf16>
    %16 = vector.extract_strided_slice %9 {offsets = [8, 0], sizes = [8, 128], strides = [1, 1]} : vector<24x128xbf16> to vector<8x128xbf16>
    %cst_6 = arith.constant dense<0.000000e+00> : vector<64x128xf32>
    %17 = tpu.matmul %15, %16, %cst_6 {dimension_numbers = #tpu.dot_dimension_numbers<[1], [0], [0], [1], [0, 0, 1, 1], [], []>} : vector<64x8xbf16>, vector<8x128xbf16>, vector<64x128xf32> -> vector<64x128xf32>
    %18 = arith.addf %13, %17 : vector<64x128xf32>
    %19 = vector.extract_strided_slice %7 {offsets = [0, 9, 0], sizes = [8, 8, 8], strides = [1, 1, 1]} : vector<8x24x8xbf16> to vector<8x8x8xbf16>
    %20 = vector.shape_cast %19 : vector<8x8x8xbf16> to vector<64x8xbf16>
    %21 = vector.extract_strided_slice %9 {offsets = [16, 0], sizes = [8, 128], strides = [1, 1]} : vector<24x128xbf16> to vector<8x128xbf16>
    %cst_7 = arith.constant dense<0.000000e+00> : vector<64x128xf32>
    %22 = tpu.matmul %20, %21, %cst_7 {dimension_numbers = #tpu.dot_dimension_numbers<[1], [0], [0], [1], [0, 0, 1, 1], [], []>} : vector<64x8xbf16>, vector<8x128xbf16>, vector<64x128xf32> -> vector<64x128xf32>
    %23 = arith.addf %18, %22 : vector<64x128xf32>
    %c1_i32 = arith.constant 1 : i32
    %24 = arith.addi %4, %c1_i32 : i32
    %25 = arith.index_cast %24 : i32 to index
    %c0_8 = arith.constant 0 : index
    %c0_9 = arith.constant 0 : index
    %26 = vector.load %arg6[%25, %c0_8, %c0_9] : memref<10x24x8xbf16, #tpu.memory_space<vmem>>, vector<8x24x8xbf16>
    %c1 = arith.constant 1 : index
    %c0_10 = arith.constant 0 : index
    %c0_11 = arith.constant 0 : index
    %27 = vector.load %arg3[%c1, %c0_10, %c0_11] : memref<3x24x128xbf16, #tpu.memory_space<vmem>>, vector<1x24x128xbf16>
    %28 = vector.shape_cast %27 : vector<1x24x128xbf16> to vector<24x128xbf16>
    %29 = vector.extract_strided_slice %26 {offsets = [0, 7, 0], sizes = [8, 8, 8], strides = [1, 1, 1]} : vector<8x24x8xbf16> to vector<8x8x8xbf16>
    %30 = vector.shape_cast %29 : vector<8x8x8xbf16> to vector<64x8xbf16>
    %31 = vector.extract_strided_slice %28 {offsets = [0, 0], sizes = [8, 128], strides = [1, 1]} : vector<24x128xbf16> to vector<8x128xbf16>
    %cst_12 = arith.constant dense<0.000000e+00> : vector<64x128xf32>
    %32 = tpu.matmul %30, %31, %cst_12 {dimension_numbers = #tpu.dot_dimension_numbers<[1], [0], [0], [1], [0, 0, 1, 1], [], []>} : vector<64x8xbf16>, vector<8x128xbf16>, vector<64x128xf32> -> vector<64x128xf32>
    %33 = arith.addf %23, %32 : vector<64x128xf32>
    %34 = vector.extract_strided_slice %26 {offsets = [0, 8, 0], sizes = [8, 8, 8], strides = [1, 1, 1]} : vector<8x24x8xbf16> to vector<8x8x8xbf16>
    %35 = vector.shape_cast %34 : vector<8x8x8xbf16> to vector<64x8xbf16>
    %36 = vector.extract_strided_slice %28 {offsets = [8, 0], sizes = [8, 128], strides = [1, 1]} : vector<24x128xbf16> to vector<8x128xbf16>
    %cst_13 = arith.constant dense<0.000000e+00> : vector<64x128xf32>
    %37 = tpu.matmul %35, %36, %cst_13 {dimension_numbers = #tpu.dot_dimension_numbers<[1], [0], [0], [1], [0, 0, 1, 1], [], []>} : vector<64x8xbf16>, vector<8x128xbf16>, vector<64x128xf32> -> vector<64x128xf32>
    %38 = arith.addf %33, %37 : vector<64x128xf32>
    %39 = vector.extract_strided_slice %26 {offsets = [0, 9, 0], sizes = [8, 8, 8], strides = [1, 1, 1]} : vector<8x24x8xbf16> to vector<8x8x8xbf16>
    %40 = vector.shape_cast %39 : vector<8x8x8xbf16> to vector<64x8xbf16>
    %41 = vector.extract_strided_slice %28 {offsets = [16, 0], sizes = [8, 128], strides = [1, 1]} : vector<24x128xbf16> to vector<8x128xbf16>
    %cst_14 = arith.constant dense<0.000000e+00> : vector<64x128xf32>
    %42 = tpu.matmul %40, %41, %cst_14 {dimension_numbers = #tpu.dot_dimension_numbers<[1], [0], [0], [1], [0, 0, 1, 1], [], []>} : vector<64x8xbf16>, vector<8x128xbf16>, vector<64x128xf32> -> vector<64x128xf32>
    %43 = arith.addf %38, %42 : vector<64x128xf32>
    %c2_i32 = arith.constant 2 : i32
    %44 = arith.addi %4, %c2_i32 : i32
    %45 = arith.index_cast %44 : i32 to index
    %c0_15 = arith.constant 0 : index
    %c0_16 = arith.constant 0 : index
    %46 = vector.load %arg6[%45, %c0_15, %c0_16] : memref<10x24x8xbf16, #tpu.memory_space<vmem>>, vector<8x24x8xbf16>
    %c2 = arith.constant 2 : index
    %c0_17 = arith.constant 0 : index
    %c0_18 = arith.constant 0 : index
    %47 = vector.load %arg3[%c2, %c0_17, %c0_18] : memref<3x24x128xbf16, #tpu.memory_space<vmem>>, vector<1x24x128xbf16>
    %48 = vector.shape_cast %47 : vector<1x24x128xbf16> to vector<24x128xbf16>
    %49 = vector.extract_strided_slice %46 {offsets = [0, 7, 0], sizes = [8, 8, 8], strides = [1, 1, 1]} : vector<8x24x8xbf16> to vector<8x8x8xbf16>
    %50 = vector.shape_cast %49 : vector<8x8x8xbf16> to vector<64x8xbf16>
    %51 = vector.extract_strided_slice %48 {offsets = [0, 0], sizes = [8, 128], strides = [1, 1]} : vector<24x128xbf16> to vector<8x128xbf16>
    %cst_19 = arith.constant dense<0.000000e+00> : vector<64x128xf32>
    %52 = tpu.matmul %50, %51, %cst_19 {dimension_numbers = #tpu.dot_dimension_numbers<[1], [0], [0], [1], [0, 0, 1, 1], [], []>} : vector<64x8xbf16>, vector<8x128xbf16>, vector<64x128xf32> -> vector<64x128xf32>
    %53 = arith.addf %43, %52 : vector<64x128xf32>
    %54 = vector.extract_strided_slice %46 {offsets = [0, 8, 0], sizes = [8, 8, 8], strides = [1, 1, 1]} : vector<8x24x8xbf16> to vector<8x8x8xbf16>
    %55 = vector.shape_cast %54 : vector<8x8x8xbf16> to vector<64x8xbf16>
    %56 = vector.extract_strided_slice %48 {offsets = [8, 0], sizes = [8, 128], strides = [1, 1]} : vector<24x128xbf16> to vector<8x128xbf16>
    %cst_20 = arith.constant dense<0.000000e+00> : vector<64x128xf32>
    %57 = tpu.matmul %55, %56, %cst_20 {dimension_numbers = #tpu.dot_dimension_numbers<[1], [0], [0], [1], [0, 0, 1, 1], [], []>} : vector<64x8xbf16>, vector<8x128xbf16>, vector<64x128xf32> -> vector<64x128xf32>
    %58 = arith.addf %53, %57 : vector<64x128xf32>
    %59 = vector.extract_strided_slice %46 {offsets = [0, 9, 0], sizes = [8, 8, 8], strides = [1, 1, 1]} : vector<8x24x8xbf16> to vector<8x8x8xbf16>
    %60 = vector.shape_cast %59 : vector<8x8x8xbf16> to vector<64x8xbf16>
    %61 = vector.extract_strided_slice %48 {offsets = [16, 0], sizes = [8, 128], strides = [1, 1]} : vector<24x128xbf16> to vector<8x128xbf16>
    %cst_21 = arith.constant dense<0.000000e+00> : vector<64x128xf32>
    %62 = tpu.matmul %60, %61, %cst_21 {dimension_numbers = #tpu.dot_dimension_numbers<[1], [0], [0], [1], [0, 0, 1, 1], [], []>} : vector<64x8xbf16>, vector<8x128xbf16>, vector<64x128xf32> -> vector<64x128xf32>
    %63 = arith.addf %58, %62 : vector<64x128xf32>
    %cst_22 = arith.constant 0.000000e+00 : f32
    %64 = vector.broadcast %cst_22 : f32 to vector<64x128xf32>
    %65 = arith.cmpf oge, %63, %64 : vector<64x128xf32>
    %cst_23 = arith.constant 2.500000e-01 : f32
    %66 = vector.broadcast %cst_23 : f32 to vector<64x128xf32>
    %67 = arith.mulf %66, %63 : vector<64x128xf32>
    %68 = arith.select %65, %63, %67 : vector<64x128xi1>, vector<64x128xf32>
    %69 = vector.extract_strided_slice %68 {offsets = [0, 0], sizes = [64, 64], strides = [1, 1]} : vector<64x128xf32> to vector<64x64xf32>
    %70 = vector.shape_cast %69 : vector<64x64xf32> to vector<1x8x8x64xf32>
    %c0_24 = arith.constant 0 : index
    %c0_25 = arith.constant 0 : index
    %c0_26 = arith.constant 0 : index
    %c0_27 = arith.constant 0 : index
    %71 = vector.load %arg5[%c0_24, %c0_25, %c0_26, %c0_27] : memref<1x8x8x64xf32, #tpu.memory_space<vmem>>, vector<1x8x8x64xf32>
    tpu.vector_store %arg5[%c0_24, %c0_25, %c0_26, %c0_27], %70 {strides = array<i32>} : memref<1x8x8x64xf32, #tpu.memory_space<vmem>>, vector<1x8x8x64xf32>,
    return
  }
  func.func @transform_0(%arg0: i32, %arg1: i32) -> (i32, i32, i32, i32) {
    %c0_i32 = arith.constant 0 : i32
    %c0_i32_0 = arith.constant 0 : i32
    %c0_i32_1 = arith.constant 0 : i32
    %c0_i32_2 = arith.constant 0 : i32
    return %arg0, %c0_i32, %c0_i32_0, %c0_i32_1 : i32, i32, i32, i32
  }
  func.func @transform_1(%arg0: i32, %arg1: i32) -> (i32, i32, i32) {
    %c0_i32 = arith.constant 0 : i32
    %c0_i32_0 = arith.constant 0 : i32
    %c0_i32_1 = arith.constant 0 : i32
    %c0_i32_2 = arith.constant 0 : i32
    return %c0_i32, %c0_i32_0, %c0_i32_1 : i32, i32, i32
  }
  func.func @transform_2(%arg0: i32, %arg1: i32) -> (i32, i32) {
    %c0_i32 = arith.constant 0 : i32
    %c0_i32_0 = arith.constant 0 : i32
    %c0_i32_1 = arith.constant 0 : i32
    return %c0_i32, %c0_i32_0 : i32, i32
  }
  func.func @transform_3(%arg0: i32, %arg1: i32) -> (i32, i32, i32, i32) {
    %c0_i32 = arith.constant 0 : i32
    %c0_i32_0 = arith.constant 0 : i32
    %c0_i32_1 = arith.constant 0 : i32
    return %arg0, %arg1, %c0_i32, %c0_i32_0 : i32, i32, i32, i32
  }
}

</mosaic_0001>

<llo_original>
// kernel: tpu_custom_call.1
$region0: #{tpu_custom_call.1}
  #allocation0 [shape = 'u32[]', space=smem, size = 0x4, offset = 0x4, fixed_abs, tag = 'smem constant byte address 0x4 - core index']
  #allocation1 [shape = 'u32[72,128]{1,0:T(1,128)}', space=vmem, size = 0x9000, scoped, tag = 'internal scratch']
  #allocation2 [shape = 'bf16[10,24,8]{2,1,0:T(8,128)(2,1)}', space=vmem, size = 0xf000, scoped, tag = 'scratch operand']
  %s0 = inlined_call_operand.hbm [shape: bf16[1,8,8,8], index: 0, kind: input, shape index: {}]
  %s1 = inlined_call_operand.hbm [shape: bf16[3,24,128], index: 1, kind: input, shape index: {}]
  %s2 = inlined_call_operand.vmem [shape: f32[1,128], index: 2, kind: input, shape index: {}]
  %s3 = inlined_call_operand.hbm [shape: f32[1,8,8,64], index: 3, kind: output, shape index: {}]
  %s4 = sld [smem:[#allocation0]]
  $region34: #{tpu_custom_call.1} parent=0
    _
  %s6 = ssub.s32 1, %s4
  %s7 = scalar_select 0, %s6, %s4
  $region1: #{tpu_custom_call.1} parent=0
    #allocation3 [shape = 'u8[16384]{0}', space=vmem, size = 0x4000, scoped, tag = 'input window, operand 0, single buffered']
    #allocation4 [shape = 's32[1]{0}', space=sflag, size = 0x4, scoped, tag = 'scoped memory for tpu_custom_call.1']
    #allocation5 [shape = 's32[1]{0}', space=sflag, size = 0x4, scoped, tag = 'scoped memory for tpu_custom_call.1']
    #allocation6 [shape = 'u8[18432]{0}', space=vmem, size = 0x4800, scoped, tag = 'input window, operand 1, single buffered']
    #allocation7 [shape = 's32[1]{0}', space=sflag, size = 0x4, scoped, tag = 'scoped memory for tpu_custom_call.1']
    #allocation8 [shape = 'u8[32768]{0}', space=vmem, size = 0x8000, scoped, tag = 'output window, operand 0, single buffered']
    %8 = vsyncpa [#allocation4], 0
    %9 = vsyncpa [#allocation7], 0
    %10 = vsyncpa [#allocation5], 0
    // Predicated region
    $region2: #{tpu_custom_call.1} parent=1 // pred_check
      _
    $region3: #{tpu_custom_call.1} parent=1 // pred_check_branch
      %12 = sbr.rel (0) target = $region5
    $region4: #{tpu_custom_call.1} parent=1 // pred_region
      %14 = vsyncadd [#allocation4], 0
      %s15 = sshll.u32 %s0, 4
      %s16 = int_to_ptr.hbm [resolvable:$true] %s15
      %s17 = sshll.u32 [#allocation3], 4
      %s18 = int_to_ptr.vmem [resolvable:$true] %s17
      %23 = dma.hbm_to_vmem [thread:$0]  %s16, 512, %s18, [#allocation4], 64, 64, 4
    $region5: #{tpu_custom_call.1} parent=1 // pred_fallthru
      _
    // Predicated region
    $region6: #{tpu_custom_call.1} parent=1 // pred_check
      _
    $region7: #{tpu_custom_call.1} parent=1 // pred_check_branch
      %25 = sbr.rel (0) target = $region9
    $region8: #{tpu_custom_call.1} parent=1 // pred_region
      %27 = vsyncadd [#allocation7], 0
      %s28 = sshll.u32 %s1, 4
      %s29 = int_to_ptr.hbm [resolvable:$true] %s28
      %s30 = sshll.u32 [#allocation6], 4
      %s31 = int_to_ptr.vmem [resolvable:$true] %s30
      %36 = dma.hbm_to_vmem [thread:$0]  %s29, 576, %s31, [#allocation7], 64, 64, 4
    $region9: #{tpu_custom_call.1} parent=1 // pred_fallthru
      _
    // Predicated region
    $region10: #{tpu_custom_call.1} parent=1 // pred_check
      _
    $region11: #{tpu_custom_call.1} parent=1 // pred_check_branch
      %38 = sbr.rel (0) target = $region13
    $region12: #{tpu_custom_call.1} parent=1 // pred_region
      _
    $region13: #{tpu_custom_call.1} parent=1 // pred_fallthru
      _
    // Predicated region
    $region14: #{tpu_custom_call.1} parent=1 // pred_check
      _
    $region15: #{tpu_custom_call.1} parent=1 // pred_check_branch
      %40 = sbr.rel (0) target = $region17
    $region16: #{tpu_custom_call.1} parent=1 // pred_region
      %42 = dma.done [#allocation4], 512
    $region17: #{tpu_custom_call.1} parent=1 // pred_fallthru
      _
    // Predicated region
    $region18: #{tpu_custom_call.1} parent=1 // pred_check
      _
    $region19: #{tpu_custom_call.1} parent=1 // pred_check_branch
      %44 = sbr.rel (0) target = $region21
    $region20: #{tpu_custom_call.1} parent=1 // pred_region
      %46 = dma.done [#allocation7], 576
    $region21: #{tpu_custom_call.1} parent=1 // pred_fallthru
      _
    %p48 = scmp.eq.s32.totalorder 0, 0
    // Predicated region
    $region22: #{tpu_custom_call.1} parent=1 // pred_check
      %p49 = pneg %p48
    $region23: #{tpu_custom_call.1} parent=1 // pred_check_branch
      %51 = sbr.rel (%p49) target = $region25
    $region24: #{tpu_custom_call.1} parent=1 // pred_region
      %vm52 = vcmask 60416
      %53 = vst.msk [vmem:[#allocation2] sm:$0xf] %vm52, 0
      %54 = vst.msk [vmem:[#allocation2 + $0x4] sm:$0xf] %vm52, 0
      %55 = vst.msk [vmem:[#allocation2 + $0x8] sm:$0xf] %vm52, 0
      %56 = vst.msk [vmem:[#allocation2 + $0xc] sm:$0xf] %vm52, 0
      %57 = vst.msk [vmem:[#allocation2 + $0x10] sm:$0xf] %vm52, 0
      %58 = vst.msk [vmem:[#allocation2 + $0x14] sm:$0xf] %vm52, 0
      %59 = vst.msk [vmem:[#allocation2 + $0x18] sm:$0xf] %vm52, 0
      %60 = vst.msk [vmem:[#allocation2 + $0x1c] sm:$0xf] %vm52, 0
      %61 = vst.msk [vmem:[#allocation2 + $0x20] sm:$0xf] %vm52, 0
      %62 = vst.msk [vmem:[#allocation2 + $0x24] sm:$0xf] %vm52, 0
      %63 = vst.msk [vmem:[#allocation2 + $0x28] sm:$0xf] %vm52, 0
      %64 = vst.msk [vmem:[#allocation2 + $0x2c] sm:$0xf] %vm52, 0
      %65 = vst.msk [vmem:[#allocation2 + $0x30] sm:$0xf] %vm52, 0
      %66 = vst.msk [vmem:[#allocation2 + $0x34] sm:$0xf] %vm52, 0
      %67 = vst.msk [vmem:[#allocation2 + $0x38] sm:$0xf] %vm52, 0
      %68 = vst.msk [vmem:[#allocation2 + $0x3c] sm:$0xf] %vm52, 0
      %69 = vst.msk [vmem:[#allocation2 + $0x40] sm:$0xf] %vm52, 0
      %70 = vst.msk [vmem:[#allocation2 + $0x44] sm:$0xf] %vm52, 0
      %71 = vst.msk [vmem:[#allocation2 + $0x48] sm:$0xf] %vm52, 0
      %72 = vst.msk [vmem:[#allocation2 + $0x4c] sm:$0xf] %vm52, 0
      %73 = vst.msk [vmem:[#allocation2 + $0x50] sm:$0xf] %vm52, 0
      %74 = vst.msk [vmem:[#allocation2 + $0x54] sm:$0xf] %vm52, 0
      %75 = vst.msk [vmem:[#allocation2 + $0x58] sm:$0xf] %vm52, 0
      %76 = vst.msk [vmem:[#allocation2 + $0x5c] sm:$0xf] %vm52, 0
      %77 = vst.msk [vmem:[#allocation2 + $0x60] sm:$0xf] %vm52, 0
      %78 = vst.msk [vmem:[#allocation2 + $0x64] sm:$0xf] %vm52, 0
      %79 = vst.msk [vmem:[#allocation2 + $0x68] sm:$0xf] %vm52, 0
      %80 = vst.msk [vmem:[#allocation2 + $0x6c] sm:$0xf] %vm52, 0
      %81 = vst.msk [vmem:[#allocation2 + $0x70] sm:$0xf] %vm52, 0
      %82 = vst.msk [vmem:[#allocation2 + $0x74] sm:$0xf] %vm52, 0
      %v83 = vld [vmem:[#allocation3] sm:$0xf]
      %v84 = vld [vmem:[#allocation3 + $0x4] sm:$0xf]
      %v85 = vld [vmem:[#allocation3 + $0x8] sm:$0xf]
      %v86 = vld [vmem:[#allocation3 + $0xc] sm:$0xf]
      %v87 = vld [vmem:[#allocation3 + $0x10] sm:$0xf]
      %v88 = vld [vmem:[#allocation3 + $0x14] sm:$0xf]
      %v89 = vld [vmem:[#allocation3 + $0x18] sm:$0xf]
      %v90 = vld [vmem:[#allocation3 + $0x1c] sm:$0xf]
      %s91 = scalar_lea.vmem [#allocation2], 12
      %92 = vst.msk [vmem:[%s91 + $0x4] sm:$0xf] %vm52, %v83
      %93 = vst.msk [vmem:[%s91 + $0x10] sm:$0xf] %vm52, %v84
      %94 = vst.msk [vmem:[%s91 + $0x1c] sm:$0xf] %vm52, %v85
      %95 = vst.msk [vmem:[%s91 + $0x28] sm:$0xf] %vm52, %v86
      %96 = vst.msk [vmem:[%s91 + $0x34] sm:$0xf] %vm52, %v87
      %97 = vst.msk [vmem:[%s91 + $0x40] sm:$0xf] %vm52, %v88
      %98 = vst.msk [vmem:[%s91 + $0x4c] sm:$0xf] %vm52, %v89
      %99 = vst.msk [vmem:[%s91 + $0x58] sm:$0xf] %vm52, %v90
    $region25: #{tpu_custom_call.1} parent=1 // pred_fallthru
      _
    %s100 = smul.u32 0, 8
    %s101 = smul.u32 %s100, 3
    %s102 = smul.addr %s101, 4
    %s103 = scalar_lea.vmem [#allocation2], %s102
    %v104 = vld [vmem:[%s103] sm:$0xf]
    %v105 = vld [vmem:[%s103 + $0x4] sm:$0xf]
    %v106 = vld [vmem:[%s103 + $0x8] sm:$0xf]
    %v107 = vld [vmem:[%s103 + $0xc] sm:$0xf]
    %v108 = vld [vmem:[%s103 + $0x10] sm:$0xf]
    %v109 = vld [vmem:[%s103 + $0x14] sm:$0xf]
    %v110 = vld [vmem:[%s103 + $0x18] sm:$0xf]
    %v111 = vld [vmem:[%s103 + $0x1c] sm:$0xf]
    %v112 = vld [vmem:[%s103 + $0x20] sm:$0xf]
    %v113 = vld [vmem:[%s103 + $0x24] sm:$0xf]
    %v114 = vld [vmem:[%s103 + $0x28] sm:$0xf]
    %v115 = vld [vmem:[%s103 + $0x2c] sm:$0xf]
    %v116 = vld [vmem:[%s103 + $0x30] sm:$0xf]
    %v117 = vld [vmem:[%s103 + $0x34] sm:$0xf]
    %v118 = vld [vmem:[%s103 + $0x38] sm:$0xf]
    %v119 = vld [vmem:[%s103 + $0x3c] sm:$0xf]
    %v120 = vld [vmem:[%s103 + $0x40] sm:$0xf]
    %v121 = vld [vmem:[%s103 + $0x44] sm:$0xf]
    %v122 = vld [vmem:[%s103 + $0x48] sm:$0xf]
    %v123 = vld [vmem:[%s103 + $0x4c] sm:$0xf]
    %v124 = vld [vmem:[%s103 + $0x50] sm:$0xf]
    %v125 = vld [vmem:[%s103 + $0x54] sm:$0xf]
    %v126 = vld [vmem:[%s103 + $0x58] sm:$0xf]
    %v127 = vld [vmem:[%s103 + $0x5c] sm:$0xf]
    %v128 = vld [vmem:[#allocation6] sm:$0xf]
    %v129 = vld [vmem:[#allocation6 + $0x4] sm:$0xf]
    %v130 = vld [vmem:[#allocation6 + $0x8] sm:$0xf]
    %vm131 = vsmask.f32 256
    %vm132 = vsmask.f32 4368
    %vm133 = vmor %vm131, %vm132
    %v135 = vshrl.u32 %v104, 16
    %v137 = vrot.slane %v135, 7
    %v138 = vrot.slane %v137, 4
    %v140 = vshrl.u32 %v105, 16
    %v142 = vrot.slane %v140, 7
    %v143 = vshll.u32 %v105, 16
    %v145 = vor.u32 %v142, %v143
    %v146 = vsel %vm133, %v138, %v145
    %v148 = vshrl.u32 %v107, 16
    %v150 = vrot.slane %v148, 7
    %v151 = vrot.slane %v150, 4
    %v153 = vshrl.u32 %v108, 16
    %v155 = vrot.slane %v153, 7
    %v156 = vshll.u32 %v108, 16
    %v158 = vor.u32 %v155, %v156
    %v159 = vsel %vm133, %v151, %v158
    %v161 = vshrl.u32 %v110, 16
    %v163 = vrot.slane %v161, 7
    %v164 = vrot.slane %v163, 4
    %v166 = vshrl.u32 %v111, 16
    %v168 = vrot.slane %v166, 7
    %v169 = vshll.u32 %v111, 16
    %v171 = vor.u32 %v168, %v169
    %v172 = vsel %vm133, %v164, %v171
    %v174 = vshrl.u32 %v113, 16
    %v176 = vrot.slane %v174, 7
    %v177 = vrot.slane %v176, 4
    %v179 = vshrl.u32 %v114, 16
    %v181 = vrot.slane %v179, 7
    %v182 = vshll.u32 %v114, 16
    %v184 = vor.u32 %v181, %v182
    %v185 = vsel %vm133, %v177, %v184
    %v187 = vshrl.u32 %v116, 16
    %v189 = vrot.slane %v187, 7
    %v190 = vrot.slane %v189, 4
    %v192 = vshrl.u32 %v117, 16
    %v194 = vrot.slane %v192, 7
    %v195 = vshll.u32 %v117, 16
    %v197 = vor.u32 %v194, %v195
    %v198 = vsel %vm133, %v190, %v197
    %v200 = vshrl.u32 %v119, 16
    %v202 = vrot.slane %v200, 7
    %v203 = vrot.slane %v202, 4
    %v205 = vshrl.u32 %v120, 16
    %v207 = vrot.slane %v205, 7
    %v208 = vshll.u32 %v120, 16
    %v210 = vor.u32 %v207, %v208
    %v211 = vsel %vm133, %v203, %v210
    %v213 = vshrl.u32 %v122, 16
    %v215 = vrot.slane %v213, 7
    %v216 = vrot.slane %v215, 4
    %v218 = vshrl.u32 %v123, 16
    %v220 = vrot.slane %v218, 7
    %v221 = vshll.u32 %v123, 16
    %v223 = vor.u32 %v220, %v221
    %v224 = vsel %vm133, %v216, %v223
    %v226 = vshrl.u32 %v125, 16
    %v228 = vrot.slane %v226, 7
    %v229 = vrot.slane %v228, 4
    %v231 = vshrl.u32 %v126, 16
    %v233 = vrot.slane %v231, 7
    %v234 = vshll.u32 %v126, 16
    %v236 = vor.u32 %v233, %v234
    %v237 = vsel %vm133, %v229, %v236
    %v246 = vunpack.c.l.b16 %v105
    %v247 = vunpack.c.l.b16 %v108
    %v248 = vunpack.c.l.b16 %v111
    %v249 = vunpack.c.l.b16 %v114
    %v250 = vunpack.c.l.b16 %v117
    %v251 = vunpack.c.l.b16 %v120
    %v252 = vunpack.c.l.b16 %v123
    %v253 = vunpack.c.l.b16 %v126
    %v254 = vpack.c.b16 %v247, %v246
    %v255 = vpack.c.b16 %v249, %v248
    %v256 = vpack.c.b16 %v251, %v250
    %v257 = vpack.c.b16 %v253, %v252
    %vm258 = vcmask 64512
    %v260 = vsel %vm258, %v254, 0
    %v263 = vsel %vm258, %v255, 0
    %v266 = vsel %vm258, %v256, 0
    %v269 = vsel %vm258, %v257, 0
    %vm271 = vcmask 1043456
    %v273 = vsel %vm271, %v129, 0
    %275 = vmatpush.bf16.msra.mxu0 0
    %276 = vmatpush.bf16.msra.mxu0 0
    %277 = vmatpush.bf16.msra.mxu0 0
    %278 = vmatpush.bf16.msra.mxu0 0
    %279 = vmatpush.bf16.msra.mxu0 0
    %280 = vmatpush.bf16.msra.mxu0 0
    %281 = vmatpush.bf16.msra.mxu0 0
    %282 = vmatpush.bf16.msra.mxu0 %v273
    %283 = vmatmul.bf16.gmra.mxu0 %v260
    %v284 = vpop.f32.mrf.mxu0
    %v285 = vadd.f32 0.0, %v284
    %v286 = vpop.f32.mrf.mxu0
    %v287 = vadd.f32 0.0, %v286
    %288 = vmatmul.bf16.gmra.mxu0 %v263
    %v289 = vpop.f32.mrf.mxu0
    %v290 = vadd.f32 0.0, %v289
    %v291 = vpop.f32.mrf.mxu0
    %v292 = vadd.f32 0.0, %v291
    %293 = vmatmul.bf16.gmra.mxu0 %v266
    %v294 = vpop.f32.mrf.mxu0
    %v295 = vadd.f32 0.0, %v294
    %v296 = vpop.f32.mrf.mxu0
    %v297 = vadd.f32 0.0, %v296
    %298 = vmatmul.bf16.gmra.mxu0 %v269
    %v299 = vpop.f32.mrf.mxu0
    %v300 = vadd.f32 0.0, %v299
    %v301 = vpop.f32.mrf.mxu0
    %v302 = vadd.f32 0.0, %v301
    %303 = vdwg.mxu0
    %v304 = vunpack.c.l.b16 %v146
    %v305 = vunpack.c.l.b16 %v159
    %v306 = vunpack.c.l.b16 %v172
    %v307 = vunpack.c.l.b16 %v185
    %v308 = vunpack.c.l.b16 %v198
    %v309 = vunpack.c.l.b16 %v211
    %v310 = vunpack.c.l.b16 %v224
    %v311 = vunpack.c.l.b16 %v237
    %v312 = vpack.c.b16 %v305, %v304
    %v313 = vpack.c.b16 %v307, %v306
    %v314 = vpack.c.b16 %v309, %v308
    %v315 = vpack.c.b16 %v311, %v310
    %v317 = vsel %vm258, %v312, 0
    %v320 = vsel %vm258, %v313, 0
    %v323 = vsel %vm258, %v314, 0
    %v326 = vsel %vm258, %v315, 0
    %v329 = vsel %vm271, %v128, 0
    %331 = vmatpush.bf16.msra.mxu0 0
    %332 = vmatpush.bf16.msra.mxu0 0
    %333 = vmatpush.bf16.msra.mxu0 0
    %334 = vmatpush.bf16.msra.mxu0 0
    %335 = vmatpush.bf16.msra.mxu0 0
    %336 = vmatpush.bf16.msra.mxu0 0
    %337 = vmatpush.bf16.msra.mxu0 0
    %338 = vmatpush.bf16.msra.mxu0 %v329
    %339 = vmatmul.bf16.gmra.mxu0 %v317
    %v340 = vpop.f32.mrf.mxu0
    %v341 = vadd.f32 %v285, %v340
    %v342 = vpop.f32.mrf.mxu0
    %v343 = vadd.f32 %v287, %v342
    %344 = vmatmul.bf16.gmra.mxu0 %v320
    %v345 = vpop.f32.mrf.mxu0
    %v346 = vadd.f32 %v290, %v345
    %v347 = vpop.f32.mrf.mxu0
    %v348 = vadd.f32 %v292, %v347
    %349 = vmatmul.bf16.gmra.mxu0 %v323
    %v350 = vpop.f32.mrf.mxu0
    %v351 = vadd.f32 %v295, %v350
    %v352 = vpop.f32.mrf.mxu0
    %v353 = vadd.f32 %v297, %v352
    %354 = vmatmul.bf16.gmra.mxu0 %v326
    %v355 = vpop.f32.mrf.mxu0
    %v356 = vadd.f32 %v300, %v355
    %v357 = vpop.f32.mrf.mxu0
    %v358 = vadd.f32 %v302, %v357
    %359 = vdwg.mxu0
    %vm360 = vsmask.f32 3328
    %vm361 = vsmask.f32 7440
    %vm362 = vmor %vm360, %vm361
    %v363 = vrot.slane %v140, 4
    %v364 = vrot.slane %v143, 5
    %v365 = vor.u32 %v363, %v364
    %v366 = vrot.slane %v365, 4
    %v368 = vshll.u32 %v106, 16
    %v370 = vrot.slane %v368, 5
    %v371 = vsel %vm362, %v366, %v370
    %v372 = vrot.slane %v153, 4
    %v373 = vrot.slane %v156, 5
    %v374 = vor.u32 %v372, %v373
    %v375 = vrot.slane %v374, 4
    %v377 = vshll.u32 %v109, 16
    %v379 = vrot.slane %v377, 5
    %v380 = vsel %vm362, %v375, %v379
    %v381 = vrot.slane %v166, 4
    %v382 = vrot.slane %v169, 5
    %v383 = vor.u32 %v381, %v382
    %v384 = vrot.slane %v383, 4
    %v386 = vshll.u32 %v112, 16
    %v388 = vrot.slane %v386, 5
    %v389 = vsel %vm362, %v384, %v388
    %v390 = vrot.slane %v179, 4
    %v391 = vrot.slane %v182, 5
    %v392 = vor.u32 %v390, %v391
    %v393 = vrot.slane %v392, 4
    %v395 = vshll.u32 %v115, 16
    %v397 = vrot.slane %v395, 5
    %v398 = vsel %vm362, %v393, %v397
    %v399 = vrot.slane %v192, 4
    %v400 = vrot.slane %v195, 5
    %v401 = vor.u32 %v399, %v400
    %v402 = vrot.slane %v401, 4
    %v404 = vshll.u32 %v118, 16
    %v406 = vrot.slane %v404, 5
    %v407 = vsel %vm362, %v402, %v406
    %v408 = vrot.slane %v205, 4
    %v409 = vrot.slane %v208, 5
    %v410 = vor.u32 %v408, %v409
    %v411 = vrot.slane %v410, 4
    %v413 = vshll.u32 %v121, 16
    %v415 = vrot.slane %v413, 5
    %v416 = vsel %vm362, %v411, %v415
    %v417 = vrot.slane %v218, 4
    %v418 = vrot.slane %v221, 5
    %v419 = vor.u32 %v417, %v418
    %v420 = vrot.slane %v419, 4
    %v422 = vshll.u32 %v124, 16
    %v424 = vrot.slane %v422, 5
    %v425 = vsel %vm362, %v420, %v424
    %v426 = vrot.slane %v231, 4
    %v427 = vrot.slane %v234, 5
    %v428 = vor.u32 %v426, %v427
    %v429 = vrot.slane %v428, 4
    %v431 = vshll.u32 %v127, 16
    %v433 = vrot.slane %v431, 5
    %v434 = vsel %vm362, %v429, %v433
    %v435 = vunpack.c.l.b16 %v371
    %v436 = vunpack.c.l.b16 %v380
    %v437 = vunpack.c.l.b16 %v389
    %v438 = vunpack.c.l.b16 %v398
    %v439 = vunpack.c.l.b16 %v407
    %v440 = vunpack.c.l.b16 %v416
    %v441 = vunpack.c.l.b16 %v425
    %v442 = vunpack.c.l.b16 %v434
    %v443 = vpack.c.b16 %v436, %v435
    %v444 = vpack.c.b16 %v438, %v437
    %v445 = vpack.c.b16 %v440, %v439
    %v446 = vpack.c.b16 %v442, %v441
    %v448 = vsel %vm258, %v443, 0
    %v451 = vsel %vm258, %v444, 0
    %v454 = vsel %vm258, %v445, 0
    %v457 = vsel %vm258, %v446, 0
    %v460 = vsel %vm271, %v130, 0
    %462 = vmatpush.bf16.msra.mxu0 0
    %463 = vmatpush.bf16.msra.mxu0 0
    %464 = vmatpush.bf16.msra.mxu0 0
    %465 = vmatpush.bf16.msra.mxu0 0
    %466 = vmatpush.bf16.msra.mxu0 0
    %467 = vmatpush.bf16.msra.mxu0 0
    %468 = vmatpush.bf16.msra.mxu0 0
    %469 = vmatpush.bf16.msra.mxu0 %v460
    %470 = vmatmul.bf16.gmra.mxu0 %v448
    %v471 = vpop.f32.mrf.mxu0
    %v472 = vadd.f32 0.0, %v471
    %v473 = vpop.f32.mrf.mxu0
    %v474 = vadd.f32 0.0, %v473
    %475 = vmatmul.bf16.gmra.mxu0 %v451
    %v476 = vpop.f32.mrf.mxu0
    %v477 = vadd.f32 0.0, %v476
    %v478 = vpop.f32.mrf.mxu0
    %v479 = vadd.f32 0.0, %v478
    %480 = vmatmul.bf16.gmra.mxu0 %v454
    %v481 = vpop.f32.mrf.mxu0
    %v482 = vadd.f32 0.0, %v481
    %v483 = vpop.f32.mrf.mxu0
    %v484 = vadd.f32 0.0, %v483
    %485 = vmatmul.bf16.gmra.mxu0 %v457
    %v486 = vpop.f32.mrf.mxu0
    %v487 = vadd.f32 0.0, %v486
    %v488 = vpop.f32.mrf.mxu0
    %v489 = vadd.f32 0.0, %v488
    %490 = vdwg.mxu0
    %v491 = vadd.f32 %v341, %v472
    %v492 = vadd.f32 %v343, %v474
    %v493 = vadd.f32 %v346, %v477
    %v494 = vadd.f32 %v348, %v479
    %v495 = vadd.f32 %v351, %v482
    %v496 = vadd.f32 %v353, %v484
    %v497 = vadd.f32 %v356, %v487
    %v498 = vadd.f32 %v358, %v489
    %s499 = sadd.s32 %s100, 1
    %s500 = smul.u32 %s499, 3
    %s501 = smul.addr %s500, 4
    %s502 = scalar_lea.vmem [#allocation2], %s501
    %v503 = vld [vmem:[%s502] sm:$0xf]
    %v504 = vld [vmem:[%s502 + $0x4] sm:$0xf]
    %v505 = vld [vmem:[%s502 + $0x8] sm:$0xf]
    %v506 = vld [vmem:[%s502 + $0xc] sm:$0xf]
    %v507 = vld [vmem:[%s502 + $0x10] sm:$0xf]
    %v508 = vld [vmem:[%s502 + $0x14] sm:$0xf]
    %v509 = vld [vmem:[%s502 + $0x18] sm:$0xf]
    %v510 = vld [vmem:[%s502 + $0x1c] sm:$0xf]
    %v511 = vld [vmem:[%s502 + $0x20] sm:$0xf]
    %v512 = vld [vmem:[%s502 + $0x24] sm:$0xf]
    %v513 = vld [vmem:[%s502 + $0x28] sm:$0xf]
    %v514 = vld [vmem:[%s502 + $0x2c] sm:$0xf]
    %v515 = vld [vmem:[%s502 + $0x30] sm:$0xf]
    %v516 = vld [vmem:[%s502 + $0x34] sm:$0xf]
    %v517 = vld [vmem:[%s502 + $0x38] sm:$0xf]
    %v518 = vld [vmem:[%s502 + $0x3c] sm:$0xf]
    %v519 = vld [vmem:[%s502 + $0x40] sm:$0xf]
    %v520 = vld [vmem:[%s502 + $0x44] sm:$0xf]
    %v521 = vld [vmem:[%s502 + $0x48] sm:$0xf]
    %v522 = vld [vmem:[%s502 + $0x4c] sm:$0xf]
    %v523 = vld [vmem:[%s502 + $0x50] sm:$0xf]
    %v524 = vld [vmem:[%s502 + $0x54] sm:$0xf]
    %v525 = vld [vmem:[%s502 + $0x58] sm:$0xf]
    %v526 = vld [vmem:[%s502 + $0x5c] sm:$0xf]
    %s527 = scalar_lea.vmem [#allocation6], 12
    %v528 = vld [vmem:[%s527] sm:$0xf]
    %v529 = vld [vmem:[%s527 + $0x4] sm:$0xf]
    %v530 = vld [vmem:[%s527 + $0x8] sm:$0xf]
    %v532 = vshrl.u32 %v503, 16
    %v534 = vrot.slane %v532, 7
    %v535 = vrot.slane %v534, 4
    %v537 = vshrl.u32 %v504, 16
    %v539 = vrot.slane %v537, 7
    %v540 = vshll.u32 %v504, 16
    %v542 = vor.u32 %v539, %v540
    %v543 = vsel %vm133, %v535, %v542
    %v545 = vshrl.u32 %v506, 16
    %v547 = vrot.slane %v545, 7
    %v548 = vrot.slane %v547, 4
    %v550 = vshrl.u32 %v507, 16
    %v552 = vrot.slane %v550, 7
    %v553 = vshll.u32 %v507, 16
    %v555 = vor.u32 %v552, %v553
    %v556 = vsel %vm133, %v548, %v555
    %v558 = vshrl.u32 %v509, 16
    %v560 = vrot.slane %v558, 7
    %v561 = vrot.slane %v560, 4
    %v563 = vshrl.u32 %v510, 16
    %v565 = vrot.slane %v563, 7
    %v566 = vshll.u32 %v510, 16
    %v568 = vor.u32 %v565, %v566
    %v569 = vsel %vm133, %v561, %v568
    %v571 = vshrl.u32 %v512, 16
    %v573 = vrot.slane %v571, 7
    %v574 = vrot.slane %v573, 4
    %v576 = vshrl.u32 %v513, 16
    %v578 = vrot.slane %v576, 7
    %v579 = vshll.u32 %v513, 16
    %v581 = vor.u32 %v578, %v579
    %v582 = vsel %vm133, %v574, %v581
    %v584 = vshrl.u32 %v515, 16
    %v586 = vrot.slane %v584, 7
    %v587 = vrot.slane %v586, 4
    %v589 = vshrl.u32 %v516, 16
    %v591 = vrot.slane %v589, 7
    %v592 = vshll.u32 %v516, 16
    %v594 = vor.u32 %v591, %v592
    %v595 = vsel %vm133, %v587, %v594
    %v597 = vshrl.u32 %v518, 16
    %v599 = vrot.slane %v597, 7
    %v600 = vrot.slane %v599, 4
    %v602 = vshrl.u32 %v519, 16
    %v604 = vrot.slane %v602, 7
    %v605 = vshll.u32 %v519, 16
    %v607 = vor.u32 %v604, %v605
    %v608 = vsel %vm133, %v600, %v607
    %v610 = vshrl.u32 %v521, 16
    %v612 = vrot.slane %v610, 7
    %v613 = vrot.slane %v612, 4
    %v615 = vshrl.u32 %v522, 16
    %v617 = vrot.slane %v615, 7
    %v618 = vshll.u32 %v522, 16
    %v620 = vor.u32 %v617, %v618
    %v621 = vsel %vm133, %v613, %v620
    %v623 = vshrl.u32 %v524, 16
    %v625 = vrot.slane %v623, 7
    %v626 = vrot.slane %v625, 4
    %v628 = vshrl.u32 %v525, 16
    %v630 = vrot.slane %v628, 7
    %v631 = vshll.u32 %v525, 16
    %v633 = vor.u32 %v630, %v631
    %v634 = vsel %vm133, %v626, %v633
    %v635 = vunpack.c.l.b16 %v543
    %v636 = vunpack.c.l.b16 %v556
    %v637 = vunpack.c.l.b16 %v569
    %v638 = vunpack.c.l.b16 %v582
    %v639 = vunpack.c.l.b16 %v595
    %v640 = vunpack.c.l.b16 %v608
    %v641 = vunpack.c.l.b16 %v621
    %v642 = vunpack.c.l.b16 %v634
    %v643 = vpack.c.b16 %v636, %v635
    %v644 = vpack.c.b16 %v638, %v637
    %v645 = vpack.c.b16 %v640, %v639
    %v646 = vpack.c.b16 %v642, %v641
    %v648 = vsel %vm258, %v643, 0
    %v651 = vsel %vm258, %v644, 0
    %v654 = vsel %vm258, %v645, 0
    %v657 = vsel %vm258, %v646, 0
    %v660 = vsel %vm271, %v528, 0
    %662 = vmatpush.bf16.msra.mxu0 0
    %663 = vmatpush.bf16.msra.mxu0 0
    %664 = vmatpush.bf16.msra.mxu0 0
    %665 = vmatpush.bf16.msra.mxu0 0
    %666 = vmatpush.bf16.msra.mxu0 0
    %667 = vmatpush.bf16.msra.mxu0 0
    %668 = vmatpush.bf16.msra.mxu0 0
    %669 = vmatpush.bf16.msra.mxu0 %v660
    %670 = vmatmul.bf16.gmra.mxu0 %v648
    %v671 = vpop.f32.mrf.mxu0
    %v672 = vadd.f32 0.0, %v671
    %v673 = vpop.f32.mrf.mxu0
    %v674 = vadd.f32 0.0, %v673
    %675 = vmatmul.bf16.gmra.mxu0 %v651
    %v676 = vpop.f32.mrf.mxu0
    %v677 = vadd.f32 0.0, %v676
    %v678 = vpop.f32.mrf.mxu0
    %v679 = vadd.f32 0.0, %v678
    %680 = vmatmul.bf16.gmra.mxu0 %v654
    %v681 = vpop.f32.mrf.mxu0
    %v682 = vadd.f32 0.0, %v681
    %v683 = vpop.f32.mrf.mxu0
    %v684 = vadd.f32 0.0, %v683
    %685 = vmatmul.bf16.gmra.mxu0 %v657
    %v686 = vpop.f32.mrf.mxu0
    %v687 = vadd.f32 0.0, %v686
    %v688 = vpop.f32.mrf.mxu0
    %v689 = vadd.f32 0.0, %v688
    %690 = vdwg.mxu0
    %v691 = vadd.f32 %v491, %v672
    %v692 = vadd.f32 %v492, %v674
    %v693 = vadd.f32 %v493, %v677
    %v694 = vadd.f32 %v494, %v679
    %v695 = vadd.f32 %v495, %v682
    %v696 = vadd.f32 %v496, %v684
    %v697 = vadd.f32 %v497, %v687
    %v698 = vadd.f32 %v498, %v689
    %v707 = vunpack.c.l.b16 %v504
    %v708 = vunpack.c.l.b16 %v507
    %v709 = vunpack.c.l.b16 %v510
    %v710 = vunpack.c.l.b16 %v513
    %v711 = vunpack.c.l.b16 %v516
    %v712 = vunpack.c.l.b16 %v519
    %v713 = vunpack.c.l.b16 %v522
    %v714 = vunpack.c.l.b16 %v525
    %v715 = vpack.c.b16 %v708, %v707
    %v716 = vpack.c.b16 %v710, %v709
    %v717 = vpack.c.b16 %v712, %v711
    %v718 = vpack.c.b16 %v714, %v713
    %v720 = vsel %vm258, %v715, 0
    %v723 = vsel %vm258, %v716, 0
    %v726 = vsel %vm258, %v717, 0
    %v729 = vsel %vm258, %v718, 0
    %v732 = vsel %vm271, %v529, 0
    %734 = vmatpush.bf16.msra.mxu0 0
    %735 = vmatpush.bf16.msra.mxu0 0
    %736 = vmatpush.bf16.msra.mxu0 0
    %737 = vmatpush.bf16.msra.mxu0 0
    %738 = vmatpush.bf16.msra.mxu0 0
    %739 = vmatpush.bf16.msra.mxu0 0
    %740 = vmatpush.bf16.msra.mxu0 0
    %741 = vmatpush.bf16.msra.mxu0 %v732
    %742 = vmatmul.bf16.gmra.mxu0 %v720
    %v743 = vpop.f32.mrf.mxu0
    %v744 = vadd.f32 0.0, %v743
    %v745 = vpop.f32.mrf.mxu0
    %v746 = vadd.f32 0.0, %v745
    %747 = vmatmul.bf16.gmra.mxu0 %v723
    %v748 = vpop.f32.mrf.mxu0
    %v749 = vadd.f32 0.0, %v748
    %v750 = vpop.f32.mrf.mxu0
    %v751 = vadd.f32 0.0, %v750
    %752 = vmatmul.bf16.gmra.mxu0 %v726
    %v753 = vpop.f32.mrf.mxu0
    %v754 = vadd.f32 0.0, %v753
    %v755 = vpop.f32.mrf.mxu0
    %v756 = vadd.f32 0.0, %v755
    %757 = vmatmul.bf16.gmra.mxu0 %v729
    %v758 = vpop.f32.mrf.mxu0
    %v759 = vadd.f32 0.0, %v758
    %v760 = vpop.f32.mrf.mxu0
    %v761 = vadd.f32 0.0, %v760
    %762 = vdwg.mxu0
    %v763 = vadd.f32 %v691, %v744
    %v764 = vadd.f32 %v692, %v746
    %v765 = vadd.f32 %v693, %v749
    %v766 = vadd.f32 %v694, %v751
    %v767 = vadd.f32 %v695, %v754
    %v768 = vadd.f32 %v696, %v756
    %v769 = vadd.f32 %v697, %v759
    %v770 = vadd.f32 %v698, %v761
    %v771 = vrot.slane %v537, 4
    %v772 = vrot.slane %v540, 5
    %v773 = vor.u32 %v771, %v772
    %v774 = vrot.slane %v773, 4
    %v776 = vshll.u32 %v505, 16
    %v778 = vrot.slane %v776, 5
    %v779 = vsel %vm362, %v774, %v778
    %v780 = vrot.slane %v550, 4
    %v781 = vrot.slane %v553, 5
    %v782 = vor.u32 %v780, %v781
    %v783 = vrot.slane %v782, 4
    %v785 = vshll.u32 %v508, 16
    %v787 = vrot.slane %v785, 5
    %v788 = vsel %vm362, %v783, %v787
    %v789 = vrot.slane %v563, 4
    %v790 = vrot.slane %v566, 5
    %v791 = vor.u32 %v789, %v790
    %v792 = vrot.slane %v791, 4
    %v794 = vshll.u32 %v511, 16
    %v796 = vrot.slane %v794, 5
    %v797 = vsel %vm362, %v792, %v796
    %v798 = vrot.slane %v576, 4
    %v799 = vrot.slane %v579, 5
    %v800 = vor.u32 %v798, %v799
    %v801 = vrot.slane %v800, 4
    %v803 = vshll.u32 %v514, 16
    %v805 = vrot.slane %v803, 5
    %v806 = vsel %vm362, %v801, %v805
    %v807 = vrot.slane %v589, 4
    %v808 = vrot.slane %v592, 5
    %v809 = vor.u32 %v807, %v808
    %v810 = vrot.slane %v809, 4
    %v812 = vshll.u32 %v517, 16
    %v814 = vrot.slane %v812, 5
    %v815 = vsel %vm362, %v810, %v814
    %v816 = vrot.slane %v602, 4
    %v817 = vrot.slane %v605, 5
    %v818 = vor.u32 %v816, %v817
    %v819 = vrot.slane %v818, 4
    %v821 = vshll.u32 %v520, 16
    %v823 = vrot.slane %v821, 5
    %v824 = vsel %vm362, %v819, %v823
    %v825 = vrot.slane %v615, 4
    %v826 = vrot.slane %v618, 5
    %v827 = vor.u32 %v825, %v826
    %v828 = vrot.slane %v827, 4
    %v830 = vshll.u32 %v523, 16
    %v832 = vrot.slane %v830, 5
    %v833 = vsel %vm362, %v828, %v832
    %v834 = vrot.slane %v628, 4
    %v835 = vrot.slane %v631, 5
    %v836 = vor.u32 %v834, %v835
    %v837 = vrot.slane %v836, 4
    %v839 = vshll.u32 %v526, 16
    %v841 = vrot.slane %v839, 5
    %v842 = vsel %vm362, %v837, %v841
    %v843 = vunpack.c.l.b16 %v779
    %v844 = vunpack.c.l.b16 %v788
    %v845 = vunpack.c.l.b16 %v797
    %v846 = vunpack.c.l.b16 %v806
    %v847 = vunpack.c.l.b16 %v815
    %v848 = vunpack.c.l.b16 %v824
    %v849 = vunpack.c.l.b16 %v833
    %v850 = vunpack.c.l.b16 %v842
    %v851 = vpack.c.b16 %v844, %v843
    %v852 = vpack.c.b16 %v846, %v845
    %v853 = vpack.c.b16 %v848, %v847
    %v854 = vpack.c.b16 %v850, %v849
    %v856 = vsel %vm258, %v851, 0
    %v859 = vsel %vm258, %v852, 0
    %v862 = vsel %vm258, %v853, 0
    %v865 = vsel %vm258, %v854, 0
    %v868 = vsel %vm271, %v530, 0
    %870 = vmatpush.bf16.msra.mxu0 0
    %871 = vmatpush.bf16.msra.mxu0 0
    %872 = vmatpush.bf16.msra.mxu0 0
    %873 = vmatpush.bf16.msra.mxu0 0
    %874 = vmatpush.bf16.msra.mxu0 0
    %875 = vmatpush.bf16.msra.mxu0 0
    %876 = vmatpush.bf16.msra.mxu0 0
    %877 = vmatpush.bf16.msra.mxu0 %v868
    %878 = vmatmul.bf16.gmra.mxu0 %v856
    %v879 = vpop.f32.mrf.mxu0
    %v880 = vadd.f32 0.0, %v879
    %v881 = vpop.f32.mrf.mxu0
    %v882 = vadd.f32 0.0, %v881
    %883 = vmatmul.bf16.gmra.mxu0 %v859
    %v884 = vpop.f32.mrf.mxu0
    %v885 = vadd.f32 0.0, %v884
    %v886 = vpop.f32.mrf.mxu0
    %v887 = vadd.f32 0.0, %v886
    %888 = vmatmul.bf16.gmra.mxu0 %v862
    %v889 = vpop.f32.mrf.mxu0
    %v890 = vadd.f32 0.0, %v889
    %v891 = vpop.f32.mrf.mxu0
    %v892 = vadd.f32 0.0, %v891
    %893 = vmatmul.bf16.gmra.mxu0 %v865
    %v894 = vpop.f32.mrf.mxu0
    %v895 = vadd.f32 0.0, %v894
    %v896 = vpop.f32.mrf.mxu0
    %v897 = vadd.f32 0.0, %v896
    %898 = vdwg.mxu0
    %v899 = vadd.f32 %v763, %v880
    %v900 = vadd.f32 %v764, %v882
    %v901 = vadd.f32 %v765, %v885
    %v902 = vadd.f32 %v766, %v887
    %v903 = vadd.f32 %v767, %v890
    %v904 = vadd.f32 %v768, %v892
    %v905 = vadd.f32 %v769, %v895
    %v906 = vadd.f32 %v770, %v897
    %s907 = sadd.s32 %s100, 2
    %s908 = smul.u32 %s907, 3
    %s909 = smul.addr %s908, 4
    %s910 = scalar_lea.vmem [#allocation2], %s909
    %v911 = vld [vmem:[%s910] sm:$0xf]
    %v912 = vld [vmem:[%s910 + $0x4] sm:$0xf]
    %v913 = vld [vmem:[%s910 + $0x8] sm:$0xf]
    %v914 = vld [vmem:[%s910 + $0xc] sm:$0xf]
    %v915 = vld [vmem:[%s910 + $0x10] sm:$0xf]
    %v916 = vld [vmem:[%s910 + $0x14] sm:$0xf]
    %v917 = vld [vmem:[%s910 + $0x18] sm:$0xf]
    %v918 = vld [vmem:[%s910 + $0x1c] sm:$0xf]
    %v919 = vld [vmem:[%s910 + $0x20] sm:$0xf]
    %v920 = vld [vmem:[%s910 + $0x24] sm:$0xf]
    %v921 = vld [vmem:[%s910 + $0x28] sm:$0xf]
    %v922 = vld [vmem:[%s910 + $0x2c] sm:$0xf]
    %v923 = vld [vmem:[%s910 + $0x30] sm:$0xf]
    %v924 = vld [vmem:[%s910 + $0x34] sm:$0xf]
    %v925 = vld [vmem:[%s910 + $0x38] sm:$0xf]
    %v926 = vld [vmem:[%s910 + $0x3c] sm:$0xf]
    %v927 = vld [vmem:[%s910 + $0x40] sm:$0xf]
    %v928 = vld [vmem:[%s910 + $0x44] sm:$0xf]
    %v929 = vld [vmem:[%s910 + $0x48] sm:$0xf]
    %v930 = vld [vmem:[%s910 + $0x4c] sm:$0xf]
    %v931 = vld [vmem:[%s910 + $0x50] sm:$0xf]
    %v932 = vld [vmem:[%s910 + $0x54] sm:$0xf]
    %v933 = vld [vmem:[%s910 + $0x58] sm:$0xf]
    %v934 = vld [vmem:[%s910 + $0x5c] sm:$0xf]
    %s935 = scalar_lea.vmem [#allocation6], 24
    %v936 = vld [vmem:[%s935] sm:$0xf]
    %v937 = vld [vmem:[%s935 + $0x4] sm:$0xf]
    %v938 = vld [vmem:[%s935 + $0x8] sm:$0xf]
    %v940 = vshrl.u32 %v911, 16
    %v942 = vrot.slane %v940, 7
    %v943 = vrot.slane %v942, 4
    %v945 = vshrl.u32 %v912, 16
    %v947 = vrot.slane %v945, 7
    %v948 = vshll.u32 %v912, 16
    %v950 = vor.u32 %v947, %v948
    %v951 = vsel %vm133, %v943, %v950
    %v953 = vshrl.u32 %v914, 16
    %v955 = vrot.slane %v953, 7
    %v956 = vrot.slane %v955, 4
    %v958 = vshrl.u32 %v915, 16
    %v960 = vrot.slane %v958, 7
    %v961 = vshll.u32 %v915, 16
    %v963 = vor.u32 %v960, %v961
    %v964 = vsel %vm133, %v956, %v963
    %v966 = vshrl.u32 %v917, 16
    %v968 = vrot.slane %v966, 7
    %v969 = vrot.slane %v968, 4
    %v971 = vshrl.u32 %v918, 16
    %v973 = vrot.slane %v971, 7
    %v974 = vshll.u32 %v918, 16
    %v976 = vor.u32 %v973, %v974
    %v977 = vsel %vm133, %v969, %v976
    %v979 = vshrl.u32 %v920, 16
    %v981 = vrot.slane %v979, 7
    %v982 = vrot.slane %v981, 4
    %v984 = vshrl.u32 %v921, 16
    %v986 = vrot.slane %v984, 7
    %v987 = vshll.u32 %v921, 16
    %v989 = vor.u32 %v986, %v987
    %v990 = vsel %vm133, %v982, %v989
    %v992 = vshrl.u32 %v923, 16
    %v994 = vrot.slane %v992, 7
    %v995 = vrot.slane %v994, 4
    %v997 = vshrl.u32 %v924, 16
    %v999 = vrot.slane %v997, 7
    %v1000 = vshll.u32 %v924, 16
    %v1002 = vor.u32 %v999, %v1000
    %v1003 = vsel %vm133, %v995, %v1002
    %v1005 = vshrl.u32 %v926, 16
    %v1007 = vrot.slane %v1005, 7
    %v1008 = vrot.slane %v1007, 4
    %v1010 = vshrl.u32 %v927, 16
    %v1012 = vrot.slane %v1010, 7
    %v1013 = vshll.u32 %v927, 16
    %v1015 = vor.u32 %v1012, %v1013
    %v1016 = vsel %vm133, %v1008, %v1015
    %v1018 = vshrl.u32 %v929, 16
    %v1020 = vrot.slane %v1018, 7
    %v1021 = vrot.slane %v1020, 4
    %v1023 = vshrl.u32 %v930, 16
    %v1025 = vrot.slane %v1023, 7
    %v1026 = vshll.u32 %v930, 16
    %v1028 = vor.u32 %v1025, %v1026
    %v1029 = vsel %vm133, %v1021, %v1028
    %v1031 = vshrl.u32 %v932, 16
    %v1033 = vrot.slane %v1031, 7
    %v1034 = vrot.slane %v1033, 4
    %v1036 = vshrl.u32 %v933, 16
    %v1038 = vrot.slane %v1036, 7
    %v1039 = vshll.u32 %v933, 16
    %v1041 = vor.u32 %v1038, %v1039
    %v1042 = vsel %vm133, %v1034, %v1041
    %v1043 = vunpack.c.l.b16 %v951
    %v1044 = vunpack.c.l.b16 %v964
    %v1045 = vunpack.c.l.b16 %v977
    %v1046 = vunpack.c.l.b16 %v990
    %v1047 = vunpack.c.l.b16 %v1003
    %v1048 = vunpack.c.l.b16 %v1016
    %v1049 = vunpack.c.l.b16 %v1029
    %v1050 = vunpack.c.l.b16 %v1042
    %v1051 = vpack.c.b16 %v1044, %v1043
    %v1052 = vpack.c.b16 %v1046, %v1045
    %v1053 = vpack.c.b16 %v1048, %v1047
    %v1054 = vpack.c.b16 %v1050, %v1049
    %v1056 = vsel %vm258, %v1051, 0
    %v1059 = vsel %vm258, %v1052, 0
    %v1062 = vsel %vm258, %v1053, 0
    %v1065 = vsel %vm258, %v1054, 0
    %v1068 = vsel %vm271, %v936, 0
    %1070 = vmatpush.bf16.msra.mxu0 0
    %1071 = vmatpush.bf16.msra.mxu0 0
    %1072 = vmatpush.bf16.msra.mxu0 0
    %1073 = vmatpush.bf16.msra.mxu0 0
    %1074 = vmatpush.bf16.msra.mxu0 0
    %1075 = vmatpush.bf16.msra.mxu0 0
    %1076 = vmatpush.bf16.msra.mxu0 0
    %1077 = vmatpush.bf16.msra.mxu0 %v1068
    %1078 = vmatmul.bf16.gmra.mxu0 %v1056
    %v1079 = vpop.f32.mrf.mxu0
    %v1080 = vadd.f32 0.0, %v1079
    %v1081 = vpop.f32.mrf.mxu0
    %v1082 = vadd.f32 0.0, %v1081
    %1083 = vmatmul.bf16.gmra.mxu0 %v1059
    %v1084 = vpop.f32.mrf.mxu0
    %v1085 = vadd.f32 0.0, %v1084
    %v1086 = vpop.f32.mrf.mxu0
    %v1087 = vadd.f32 0.0, %v1086
    %1088 = vmatmul.bf16.gmra.mxu0 %v1062
    %v1089 = vpop.f32.mrf.mxu0
    %v1090 = vadd.f32 0.0, %v1089
    %v1091 = vpop.f32.mrf.mxu0
    %v1092 = vadd.f32 0.0, %v1091
    %1093 = vmatmul.bf16.gmra.mxu0 %v1065
    %v1094 = vpop.f32.mrf.mxu0
    %v1095 = vadd.f32 0.0, %v1094
    %v1096 = vpop.f32.mrf.mxu0
    %v1097 = vadd.f32 0.0, %v1096
    %1098 = vdwg.mxu0
    %v1099 = vadd.f32 %v899, %v1080
    %v1100 = vadd.f32 %v900, %v1082
    %v1101 = vadd.f32 %v901, %v1085
    %v1102 = vadd.f32 %v902, %v1087
    %v1103 = vadd.f32 %v903, %v1090
    %v1104 = vadd.f32 %v904, %v1092
    %v1105 = vadd.f32 %v905, %v1095
    %v1106 = vadd.f32 %v906, %v1097
    %v1115 = vunpack.c.l.b16 %v912
    %v1116 = vunpack.c.l.b16 %v915
    %v1117 = vunpack.c.l.b16 %v918
    %v1118 = vunpack.c.l.b16 %v921
    %v1119 = vunpack.c.l.b16 %v924
    %v1120 = vunpack.c.l.b16 %v927
    %v1121 = vunpack.c.l.b16 %v930
    %v1122 = vunpack.c.l.b16 %v933
    %v1123 = vpack.c.b16 %v1116, %v1115
    %v1124 = vpack.c.b16 %v1118, %v1117
    %v1125 = vpack.c.b16 %v1120, %v1119
    %v1126 = vpack.c.b16 %v1122, %v1121
    %v1128 = vsel %vm258, %v1123, 0
    %v1131 = vsel %vm258, %v1124, 0
    %v1134 = vsel %vm258, %v1125, 0
    %v1137 = vsel %vm258, %v1126, 0
    %v1140 = vsel %vm271, %v937, 0
    %1142 = vmatpush.bf16.msra.mxu0 0
    %1143 = vmatpush.bf16.msra.mxu0 0
    %1144 = vmatpush.bf16.msra.mxu0 0
    %1145 = vmatpush.bf16.msra.mxu0 0
    %1146 = vmatpush.bf16.msra.mxu0 0
    %1147 = vmatpush.bf16.msra.mxu0 0
    %1148 = vmatpush.bf16.msra.mxu0 0
    %1149 = vmatpush.bf16.msra.mxu0 %v1140
    %1150 = vmatmul.bf16.gmra.mxu0 %v1128
    %v1151 = vpop.f32.mrf.mxu0
    %v1152 = vadd.f32 0.0, %v1151
    %v1153 = vpop.f32.mrf.mxu0
    %v1154 = vadd.f32 0.0, %v1153
    %1155 = vmatmul.bf16.gmra.mxu0 %v1131
    %v1156 = vpop.f32.mrf.mxu0
    %v1157 = vadd.f32 0.0, %v1156
    %v1158 = vpop.f32.mrf.mxu0
    %v1159 = vadd.f32 0.0, %v1158
    %1160 = vmatmul.bf16.gmra.mxu0 %v1134
    %v1161 = vpop.f32.mrf.mxu0
    %v1162 = vadd.f32 0.0, %v1161
    %v1163 = vpop.f32.mrf.mxu0
    %v1164 = vadd.f32 0.0, %v1163
    %1165 = vmatmul.bf16.gmra.mxu0 %v1137
    %v1166 = vpop.f32.mrf.mxu0
    %v1167 = vadd.f32 0.0, %v1166
    %v1168 = vpop.f32.mrf.mxu0
    %v1169 = vadd.f32 0.0, %v1168
    %1170 = vdwg.mxu0
    %v1171 = vadd.f32 %v1099, %v1152
    %v1172 = vadd.f32 %v1100, %v1154
    %v1173 = vadd.f32 %v1101, %v1157
    %v1174 = vadd.f32 %v1102, %v1159
    %v1175 = vadd.f32 %v1103, %v1162
    %v1176 = vadd.f32 %v1104, %v1164
    %v1177 = vadd.f32 %v1105, %v1167
    %v1178 = vadd.f32 %v1106, %v1169
    %v1179 = vrot.slane %v945, 4
    %v1180 = vrot.slane %v948, 5
    %v1181 = vor.u32 %v1179, %v1180
    %v1182 = vrot.slane %v1181, 4
    %v1184 = vshll.u32 %v913, 16
    %v1186 = vrot.slane %v1184, 5
    %v1187 = vsel %vm362, %v1182, %v1186
    %v1188 = vrot.slane %v958, 4
    %v1189 = vrot.slane %v961, 5
    %v1190 = vor.u32 %v1188, %v1189
    %v1191 = vrot.slane %v1190, 4
    %v1193 = vshll.u32 %v916, 16
    %v1195 = vrot.slane %v1193, 5
    %v1196 = vsel %vm362, %v1191, %v1195
    %v1197 = vrot.slane %v971, 4
    %v1198 = vrot.slane %v974, 5
    %v1199 = vor.u32 %v1197, %v1198
    %v1200 = vrot.slane %v1199, 4
    %v1202 = vshll.u32 %v919, 16
    %v1204 = vrot.slane %v1202, 5
    %v1205 = vsel %vm362, %v1200, %v1204
    %v1206 = vrot.slane %v984, 4
    %v1207 = vrot.slane %v987, 5
    %v1208 = vor.u32 %v1206, %v1207
    %v1209 = vrot.slane %v1208, 4
    %v1211 = vshll.u32 %v922, 16
    %v1213 = vrot.slane %v1211, 5
    %v1214 = vsel %vm362, %v1209, %v1213
    %v1215 = vrot.slane %v997, 4
    %v1216 = vrot.slane %v1000, 5
    %v1217 = vor.u32 %v1215, %v1216
    %v1218 = vrot.slane %v1217, 4
    %v1220 = vshll.u32 %v925, 16
    %v1222 = vrot.slane %v1220, 5
    %v1223 = vsel %vm362, %v1218, %v1222
    %v1224 = vrot.slane %v1010, 4
    %v1225 = vrot.slane %v1013, 5
    %v1226 = vor.u32 %v1224, %v1225
    %v1227 = vrot.slane %v1226, 4
    %v1229 = vshll.u32 %v928, 16
    %v1231 = vrot.slane %v1229, 5
    %v1232 = vsel %vm362, %v1227, %v1231
    %v1233 = vrot.slane %v1023, 4
    %v1234 = vrot.slane %v1026, 5
    %v1235 = vor.u32 %v1233, %v1234
    %v1236 = vrot.slane %v1235, 4
    %v1238 = vshll.u32 %v931, 16
    %v1240 = vrot.slane %v1238, 5
    %v1241 = vsel %vm362, %v1236, %v1240
    %v1242 = vrot.slane %v1036, 4
    %v1243 = vrot.slane %v1039, 5
    %v1244 = vor.u32 %v1242, %v1243
    %v1245 = vrot.slane %v1244, 4
    %v1247 = vshll.u32 %v934, 16
    %v1249 = vrot.slane %v1247, 5
    %v1250 = vsel %vm362, %v1245, %v1249
    %v1251 = vunpack.c.l.b16 %v1187
    %v1252 = vunpack.c.l.b16 %v1196
    %v1253 = vunpack.c.l.b16 %v1205
    %v1254 = vunpack.c.l.b16 %v1214
    %v1255 = vunpack.c.l.b16 %v1223
    %v1256 = vunpack.c.l.b16 %v1232
    %v1257 = vunpack.c.l.b16 %v1241
    %v1258 = vunpack.c.l.b16 %v1250
    %v1259 = vpack.c.b16 %v1252, %v1251
    %v1260 = vpack.c.b16 %v1254, %v1253
    %v1261 = vpack.c.b16 %v1256, %v1255
    %v1262 = vpack.c.b16 %v1258, %v1257
    %v1264 = vsel %vm258, %v1259, 0
    %v1267 = vsel %vm258, %v1260, 0
    %v1270 = vsel %vm258, %v1261, 0
    %v1273 = vsel %vm258, %v1262, 0
    %v1276 = vsel %vm271, %v938, 0
    %1278 = vmatpush.bf16.msra.mxu0 0
    %1279 = vmatpush.bf16.msra.mxu0 0
    %1280 = vmatpush.bf16.msra.mxu0 0
    %1281 = vmatpush.bf16.msra.mxu0 0
    %1282 = vmatpush.bf16.msra.mxu0 0
    %1283 = vmatpush.bf16.msra.mxu0 0
    %1284 = vmatpush.bf16.msra.mxu0 0
    %1285 = vmatpush.bf16.msra.mxu0 %v1276
    %1286 = vmatmul.bf16.gmra.mxu0 %v1264
    %v1287 = vpop.f32.mrf.mxu0
    %v1288 = vadd.f32 0.0, %v1287
    %v1289 = vpop.f32.mrf.mxu0
    %v1290 = vadd.f32 0.0, %v1289
    %1291 = vmatmul.bf16.gmra.mxu0 %v1267
    %v1292 = vpop.f32.mrf.mxu0
    %v1293 = vadd.f32 0.0, %v1292
    %v1294 = vpop.f32.mrf.mxu0
    %v1295 = vadd.f32 0.0, %v1294
    %1296 = vmatmul.bf16.gmra.mxu0 %v1270
    %v1297 = vpop.f32.mrf.mxu0
    %v1298 = vadd.f32 0.0, %v1297
    %v1299 = vpop.f32.mrf.mxu0
    %v1300 = vadd.f32 0.0, %v1299
    %1301 = vmatmul.bf16.gmra.mxu0 %v1273
    %v1302 = vpop.f32.mrf.mxu0
    %v1303 = vadd.f32 0.0, %v1302
    %v1304 = vpop.f32.mrf.mxu0
    %v1305 = vadd.f32 0.0, %v1304
    %1306 = vdwg.mxu0
    %v1307 = vadd.f32 %v1171, %v1288
    %v1308 = vadd.f32 %v1172, %v1290
    %v1309 = vadd.f32 %v1173, %v1293
    %v1310 = vadd.f32 %v1174, %v1295
    %v1311 = vadd.f32 %v1175, %v1298
    %v1312 = vadd.f32 %v1176, %v1300
    %v1313 = vadd.f32 %v1177, %v1303
    %v1314 = vadd.f32 %v1178, %v1305
    %vm1315 = vcmp.ge.f32.partialorder %v1307, 0.0
    %vm1316 = vcmp.ge.f32.partialorder %v1308, 0.0
    %vm1317 = vcmp.ge.f32.partialorder %v1309, 0.0
    %vm1318 = vcmp.ge.f32.partialorder %v1310, 0.0
    %vm1319 = vcmp.ge.f32.partialorder %v1311, 0.0
    %vm1320 = vcmp.ge.f32.partialorder %v1312, 0.0
    %vm1321 = vcmp.ge.f32.partialorder %v1313, 0.0
    %vm1322 = vcmp.ge.f32.partialorder %v1314, 0.0
    %v1323 = vmul.f32 %v1307, 0.25
    %v1324 = vmul.f32 %v1308, 0.25
    %v1325 = vmul.f32 %v1309, 0.25
    %v1326 = vmul.f32 %v1310, 0.25
    %v1327 = vmul.f32 %v1311, 0.25
    %v1328 = vmul.f32 %v1312, 0.25
    %v1329 = vmul.f32 %v1313, 0.25
    %v1330 = vmul.f32 %v1314, 0.25
    %v1331 = vsel %vm1315, %v1307, %v1323
    %v1332 = vsel %vm1316, %v1308, %v1324
    %v1333 = vsel %vm1317, %v1309, %v1325
    %v1334 = vsel %vm1318, %v1310, %v1326
    %v1335 = vsel %vm1319, %v1311, %v1327
    %v1336 = vsel %vm1320, %v1312, %v1328
    %v1337 = vsel %vm1321, %v1313, %v1329
    %v1338 = vsel %vm1322, %v1314, %v1330
    %vm1339 = vcmask 523264
    %1340 = vst.msk [vmem:[#allocation8] sm:$0xff] %vm1339, %v1331
    %1341 = vst.msk [vmem:[#allocation8 + $0x8] sm:$0xff] %vm1339, %v1332
    %1342 = vst.msk [vmem:[#allocation8 + $0x10] sm:$0xff] %vm1339, %v1333
    %1343 = vst.msk [vmem:[#allocation8 + $0x18] sm:$0xff] %vm1339, %v1334
    %1344 = vst.msk [vmem:[#allocation8 + $0x20] sm:$0xff] %vm1339, %v1335
    %1345 = vst.msk [vmem:[#allocation8 + $0x28] sm:$0xff] %vm1339, %v1336
    %1346 = vst.msk [vmem:[#allocation8 + $0x30] sm:$0xff] %vm1339, %v1337
    %1347 = vst.msk [vmem:[#allocation8 + $0x38] sm:$0xff] %vm1339, %v1338
    // Predicated region
    $region26: #{tpu_custom_call.1} parent=1 // pred_check
      _
    $region27: #{tpu_custom_call.1} parent=1 // pred_check_branch
      %1349 = sbr.rel (0) target = $region29
    $region28: #{tpu_custom_call.1} parent=1 // pred_region
      %1351 = vsyncadd [#allocation5], 0
      %s1352 = sshll.u32 [#allocation8], 4
      %s1353 = int_to_ptr.vmem [resolvable:$true] %s1352
      %s1354 = sshll.u32 %s3, 4
      %s1355 = int_to_ptr.hbm [resolvable:$true] %s1354
      %1360 = dma.vmem_to_hbm [thread:$0]  %s1353, 1024, %s1355, [#allocation5], 128, 128, 8
    $region29: #{tpu_custom_call.1} parent=1 // pred_fallthru
      _
    // Predicated region
    $region30: #{tpu_custom_call.1} parent=1 // pred_check
      _
    $region31: #{tpu_custom_call.1} parent=1 // pred_check_branch
      %1362 = sbr.rel (0) target = $region33
    $region32: #{tpu_custom_call.1} parent=1 // pred_region
      %1364 = dma.done [#allocation5], 1024
    $region33: #{tpu_custom_call.1} parent=1 // pred_fallthru
      _
    %1365 = vsyncpa [#allocation4], 1
    %1366 = vsyncpa [#allocation7], 1
    %1367 = vsyncpa [#allocation5], 1

</llo_original>
